<compile_context>
chip_gen: v5e
topology: v5e:2x2
jax: 0.10.0
libtpu: 0.0.40
codegen_flags: <defaults>
</compile_context>

<pallas_src>
import numpy as np
import jax
import jax.numpy as jnp
from jax.experimental import pallas as pl
from jax.experimental.pallas import tpu as pltpu

B = 2
INPUT_DIM = 524          # forced by conv_output_size = 64 * 64 in the torch module
HIDDEN = 32              # small hidden_dim (module default 256 is a free parameter)
OUT_DIM = 6
C1 = 32                  # conv1 out channels
C2 = 64                  # conv2 out channels
L1 = 130                 # conv1 output length, (524 - 8)//4 + 1
L2 = 64                  # conv2 output length, (130 - 4)//2 + 1
FLAT = C2 * L2           # 4096

# ---- packed small-operand slab layout: (176, 64) f32, sliced with static views in-kernel ------
_ROW_W1 = 0                      # rows  0..11  : dual conv1 weight (12, 64)
_ROW_B1 = 12                     # row   12     : dual conv1 bias   (1, 64)
_ROW_B2 = 13                     # row   13     : conv2 bias        (1, 64)
_ROW_BFC = 14                    # row   14     : fc bias           (1, HIDDEN)
_ROW_BOUT = 15                   # row   15     : out bias          (1, OUT_DIM)
_ROW_WOUT = 16                   # rows 16..47  : out weight        (HIDDEN, OUT_DIM)
_ROW_W2 = 48                     # rows 48..175 : conv2 weight      (4*C1, C2), 8-aligned start
_SLAB_ROWS = _ROW_W2 + 4 * C1    # 176


# -----------------------------------------------------------------------------------------------
# Fused kernel: conv1 + ReLU + conv2 + ReLU + flatten + fc + ReLU + out + softmax (whole batch)
# -----------------------------------------------------------------------------------------------
def cnn_actor_kernel(p_ref, slab_ref, wfc_ref, o_ref):
    # p:    (65*B, 12)  conv1 dual-position patches, row t*B + b = x[b, 8t : 8t+12]
    # slab: (176, 64)   packed small operands (see layout above), f32
    # wfc:  (4096, H)   fc weight, rows permuted on host to match the flatten, bfloat16
    # o:    (B, O)
    batch = o_ref.shape[0]

    w1 = slab_ref[_ROW_W1:_ROW_B1, :]                     # (12, 64)   dual conv1 weight
    b1 = slab_ref[_ROW_B1:_ROW_B2, :]                     # (1, 64)
    b2 = slab_ref[_ROW_B2:_ROW_BFC, :]                    # (1, 64)
    bfc = slab_ref[_ROW_BFC:_ROW_BOUT, 0:HIDDEN]          # (1, H)
    bout = slab_ref[_ROW_BOUT:_ROW_WOUT, 0:OUT_DIM]       # (1, O)
    wout = slab_ref[_ROW_WOUT:_ROW_W2, 0:OUT_DIM]         # (H, O)
    w2 = slab_ref[_ROW_W2:_SLAB_ROWS, :]                  # (128, 64)  rows = tap*32 + in_c

    # conv1 + ReLU: all batches and both dual positions in ONE (65B,12)x(12,64) MXU pass.
    g1 = jnp.maximum(
        jnp.dot(p_ref[...], w1, preferred_element_type=jnp.float32) + b1, 0.0)       # (65B, 64)

    # conv2 im2col: row t*B+b = [h1(2t), h1(2t+1), h1(2t+2), h1(2t+3)] for batch b -> one K=128
    # matmul for the whole batch.
    nrow = L2 * batch
    h1cat = jnp.concatenate([g1[0:nrow, :], g1[batch:nrow + batch, :]], axis=1)      # (64B, 128)
    act2 = jnp.maximum(
        jnp.dot(h1cat, w2, preferred_element_type=jnp.float32) + b2, 0.0)            # (64B, 64)

    # Single batch-stacked flatten: halving lane-concats; because rows are t*B + b, the final
    # row index is exactly the batch index. wfc rows were permuted on the host to this order.
    f = act2
    while f.shape[0] > batch:
        half = f.shape[0] // 2
        f = jnp.concatenate([f[:half, :], f[half:, :]], axis=1)                      # (B, 4096)

    wfc = wfc_ref[...].astype(jnp.float32)                # bf16 -> f32 in VMEM (cheap VPU pass)
    z = jnp.maximum(
        jnp.dot(f, wfc, preferred_element_type=jnp.float32) + bfc, 0.0)              # (B, H)
    logits = jnp.dot(z, wout, preferred_element_type=jnp.float32) + bout             # (B, O)

    m = jnp.max(logits, axis=-1, keepdims=True)
    e = jnp.exp(logits - m)
    # exact normalization: it is a (B,1) divide, not on any critical path
    o_ref[...] = e / jnp.sum(e, axis=-1, keepdims=True)


# -----------------------------------------------------------------------------------------------
# One-time host-side weight rearrangement (hoisted off the per-call path)
# -----------------------------------------------------------------------------------------------
def _flatten_src_order(batch):
    """For each lane j of the kernel's stacked flatten, the (t*C2 + c) id that lands there."""
    ids = np.broadcast_to(np.arange(L2 * C2, dtype=np.int64).reshape(L2, 1, C2),
                          (L2, batch, C2)).reshape(L2 * batch, C2).copy()
    f = ids
    while f.shape[0] > batch:
        half = f.shape[0] // 2
        f = np.concatenate([f[:half], f[half:]], axis=1)
    assert (f == f[0:1]).all()        # column mapping is batch-row independent
    return f[0]                       # (FLAT,)


def prepare_params(W1, b1, W2, b2, Wfc, bfc, Wout, bout, batch=B):
    """Pack PyTorch-shaped weights once into (slab_f32, wfc_bf16) consumed by the kernel."""
    W1 = np.asarray(W1, np.float32); b1 = np.asarray(b1, np.float32)
    W2 = np.asarray(W2, np.float32); b2 = np.asarray(b2, np.float32)
    Wfc = np.asarray(Wfc, np.float32); bfc = np.asarray(bfc, np.float32)
    Wout = np.asarray(Wout, np.float32); bout = np.asarray(bout, np.float32)

    slab = np.zeros((_SLAB_ROWS, 2 * C1), np.float32)
    w1_t = W1[:, 0, :].T                                       # (8, C1) [tap, out_c]
    # dual conv1 weight: column block 0 -> position 2t (taps 0..7), block 1 -> 2t+1 (taps 4..11)
    slab[_ROW_W1 + 0:_ROW_W1 + 8, 0:C1] = w1_t
    slab[_ROW_W1 + 4:_ROW_W1 + 12, C1:2 * C1] = w1_t
    slab[_ROW_B1, 0:C1] = b1
    slab[_ROW_B1, C1:2 * C1] = b1
    slab[_ROW_B2, 0:C2] = b2
    slab[_ROW_BFC, 0:HIDDEN] = bfc
    slab[_ROW_BOUT, 0:OUT_DIM] = bout
    slab[_ROW_WOUT:_ROW_WOUT + HIDDEN, 0:OUT_DIM] = Wout.T
    slab[_ROW_W2:_SLAB_ROWS, 0:C2] = np.transpose(W2, (2, 1, 0)).reshape(4 * C1, C2)

    # map kernel-flatten lane j -> torch flat index c*L2 + t, permute fc weight rows to match,
    # and cast the one big weight to bf16 (activations / accumulation stay f32 in the kernel).
    src = _flatten_src_order(batch)
    torch_idx = (src % C2) * L2 + (src // C2)
    wfc_m = Wfc.T[torch_idx]                                   # (FLAT, HIDDEN)

    return jnp.asarray(slab), jnp.asarray(wfc_m).astype(jnp.bfloat16)


_PATCH_IDX = np.arange(L1 // 2)[:, None] * 8 + np.arange(12)[None, :]    # (65, 12), max 523


@jax.jit
def cnn_actor_pallas(x, slab, wfc_bf16):
    """x: (B, 524) float32. slab/wfc_bf16: output of prepare_params()."""
    batch = x.shape[0]
    # im2col gather fused into the same jit as the pallas_call: one dispatch, no standalone
    # gather launch or extra HBM round-trip for the tiny patch buffer.
    pat = x[:, _PATCH_IDX]                                               # (B, 65, 12)
    pat = jnp.transpose(pat, (1, 0, 2)).reshape(_PATCH_IDX.shape[0] * batch, 12)  # row = t*B + b

    vmem = pl.BlockSpec(memory_space=pltpu.MemorySpace.VMEM)
    return pl.pallas_call(
        cnn_actor_kernel,
        out_shape=jax.ShapeDtypeStruct((batch, OUT_DIM), jnp.float32),
        in_specs=[vmem, vmem, vmem],
        out_specs=vmem,
    )(pat, slab, wfc_bf16)


# -----------------------------------------------------------------------------------------------
# Pure-JAX reference with PyTorch semantics (NCW convs, channel-major flatten), full f32
# -----------------------------------------------------------------------------------------------
def cnn_actor_ref(x, W1, b1, W2, b2, Wfc, bfc, Wout, bout):
    h = x[:, None, :]  # unsqueeze(1) -> (B, 1, L)
    h = jax.lax.conv_general_dilated(h, W1, window_strides=(4,), padding="VALID",
                                     dimension_numbers=("NCH", "OIH", "NCH"))
    h = jax.nn.relu(h + b1[None, :, None])
    h = jax.lax.conv_general_dilated(h, W2, window_strides=(2,), padding="VALID",
                                     dimension_numbers=("NCH", "OIH", "NCH"))
    h = jax.nn.relu(h + b2[None, :, None])
    h = h.reshape(h.shape[0], -1)
    h = jax.nn.relu(h @ Wfc.T + bfc)
    logits = h @ Wout.T + bout
    return jax.nn.softmax(logits, axis=-1)


if __name__ == "__main__":
    key = jax.random.PRNGKey(0)
    ks = jax.random.split(key, 9)
    # deterministic synthetic parameters (PyTorch shapes)
    W1 = jax.random.normal(ks[0], (C1, 1, 8), jnp.float32) / np.sqrt(8.0)
    b1 = jax.random.normal(ks[1], (C1,), jnp.float32) * 0.01
    W2 = jax.random.normal(ks[2], (C2, C1, 4), jnp.float32) / np.sqrt(C1 * 4.0)
    b2 = jax.random.normal(ks[3], (C2,), jnp.float32) * 0.01
    Wfc = jax.random.normal(ks[4], (HIDDEN, FLAT), jnp.float32) / np.sqrt(float(FLAT))
    bfc = jax.random.normal(ks[5], (HIDDEN,), jnp.float32) * 0.01
    Wout = jax.random.normal(ks[6], (OUT_DIM, HIDDEN), jnp.float32) / np.sqrt(float(HIDDEN))
    bout = jax.random.normal(ks[7], (OUT_DIM,), jnp.float32) * 0.01

    x = jax.random.normal(ks[8], (B, INPUT_DIM), jnp.float32)

    slab, wfc_bf16 = prepare_params(W1, b1, W2, b2, Wfc, bfc, Wout, bout)   # one-time glue

    out = jax.block_until_ready(cnn_actor_pallas(x, slab, wfc_bf16))
    ref = jax.block_until_ready(cnn_actor_ref(x, W1, b1, W2, b2, Wfc, bfc, Wout, bout))

    # bf16 fc weight (f32 accumulation) => slightly relaxed tolerance vs. the pure-f32 reference.
    np.testing.assert_allclose(np.asarray(out), np.asarray(ref), rtol=5e-3, atol=1e-3)
    assert out.shape == (B, OUT_DIM)
    np.testing.assert_allclose(np.asarray(out).sum(axis=-1), np.ones(B), rtol=1e-5, atol=1e-5)

    print("KERNEL_OK")
</pallas_src>

<mosaic_0001>
module attributes {stable_mosaic.version = 11 : i64} {
  func.func @cnn_actor_kernel(%arg0: memref<130x12xf32, #tpu.memory_space<vmem>>, %arg1: memref<176x64xf32, #tpu.memory_space<vmem>>, %arg2: memref<4096x32xbf16, #tpu.memory_space<vmem>>, %arg3: memref<2x6xf32, #tpu.memory_space<vmem>>) attributes {dimension_semantics = [], scalar_prefetch = 0 : i64, scratch_operands = 0 : i64, tpu.core_type = #tpu.core_type<tc>} {
    %c0 = arith.constant 0 : index
    %c0_0 = arith.constant 0 : index
    %0 = vector.load %arg1[%c0, %c0_0] : memref<176x64xf32, #tpu.memory_space<vmem>>, vector<12x64xf32>
    %c12 = arith.constant 12 : index
    %c0_1 = arith.constant 0 : index
    %1 = vector.load %arg1[%c12, %c0_1] : memref<176x64xf32, #tpu.memory_space<vmem>>, vector<1x64xf32>
    %c13 = arith.constant 13 : index
    %c0_2 = arith.constant 0 : index
    %2 = vector.load %arg1[%c13, %c0_2] : memref<176x64xf32, #tpu.memory_space<vmem>>, vector<1x64xf32>
    %c14 = arith.constant 14 : index
    %c0_3 = arith.constant 0 : index
    %3 = vector.load %arg1[%c14, %c0_3] : memref<176x64xf32, #tpu.memory_space<vmem>>, vector<1x32xf32>
    %c15 = arith.constant 15 : index
    %c0_4 = arith.constant 0 : index
    %4 = vector.load %arg1[%c15, %c0_4] : memref<176x64xf32, #tpu.memory_space<vmem>>, vector<1x6xf32>
    %c16 = arith.constant 16 : index
    %c0_5 = arith.constant 0 : index
    %5 = vector.load %arg1[%c16, %c0_5] : memref<176x64xf32, #tpu.memory_space<vmem>>, vector<32x6xf32>
    %c48 = arith.constant 48 : index
    %c0_6 = arith.constant 0 : index
    %6 = vector.load %arg1[%c48, %c0_6] : memref<176x64xf32, #tpu.memory_space<vmem>>, vector<128x64xf32>
    %c0_7 = arith.constant 0 : index
    %c0_8 = arith.constant 0 : index
    %7 = vector.load %arg0[%c0_7, %c0_8] : memref<130x12xf32, #tpu.memory_space<vmem>>, vector<130x12xf32>
    %cst = arith.constant dense<0.000000e+00> : vector<130x64xf32>
    %8 = tpu.matmul %7, %0, %cst {dimension_numbers = #tpu.dot_dimension_numbers<[1], [0], [0], [1], [0, 0, 1, 1], [], []>} : vector<130x12xf32>, vector<12x64xf32>, vector<130x64xf32> -> vector<130x64xf32>
    %9 = vector.broadcast %1 : vector<1x64xf32> to vector<130x64xf32>
    %10 = arith.addf %8, %9 : vector<130x64xf32>
    %cst_9 = arith.constant 0.000000e+00 : f32
    %11 = vector.broadcast %cst_9 : f32 to vector<130x64xf32>
    %12 = arith.maximumf %10, %11 : vector<130x64xf32>
    %13 = vector.extract_strided_slice %12 {offsets = [0, 0], sizes = [128, 64], strides = [1, 1]} : vector<130x64xf32> to vector<128x64xf32>
    %14 = vector.extract_strided_slice %12 {offsets = [2, 0], sizes = [128, 64], strides = [1, 1]} : vector<130x64xf32> to vector<128x64xf32>
    %15 = tpu.concatenate %13, %14 in 1 : vector<128x64xf32>, vector<128x64xf32> -> vector<128x128xf32>
    %cst_10 = arith.constant dense<0.000000e+00> : vector<128x64xf32>
    %16 = tpu.matmul %15, %6, %cst_10 {dimension_numbers = #tpu.dot_dimension_numbers<[1], [0], [0], [1], [0, 0, 1, 1], [], []>} : vector<128x128xf32>, vector<128x64xf32>, vector<128x64xf32> -> vector<128x64xf32>
    %17 = vector.broadcast %2 : vector<1x64xf32> to vector<128x64xf32>
    %18 = arith.addf %16, %17 : vector<128x64xf32>
    %cst_11 = arith.constant 0.000000e+00 : f32
    %19 = vector.broadcast %cst_11 : f32 to vector<128x64xf32>
    %20 = arith.maximumf %18, %19 : vector<128x64xf32>
    %21 = vector.extract_strided_slice %20 {offsets = [0, 0], sizes = [64, 64], strides = [1, 1]} : vector<128x64xf32> to vector<64x64xf32>
    %22 = vector.extract_strided_slice %20 {offsets = [64, 0], sizes = [64, 64], strides = [1, 1]} : vector<128x64xf32> to vector<64x64xf32>
    %23 = tpu.concatenate %21, %22 in 1 : vector<64x64xf32>, vector<64x64xf32> -> vector<64x128xf32>
    %24 = vector.extract_strided_slice %23 {offsets = [0, 0], sizes = [32, 128], strides = [1, 1]} : vector<64x128xf32> to vector<32x128xf32>
    %25 = vector.extract_strided_slice %23 {offsets = [32, 0], sizes = [32, 128], strides = [1, 1]} : vector<64x128xf32> to vector<32x128xf32>
    %26 = tpu.concatenate %24, %25 in 1 : vector<32x128xf32>, vector<32x128xf32> -> vector<32x256xf32>
    %27 = vector.extract_strided_slice %26 {offsets = [0, 0], sizes = [16, 256], strides = [1, 1]} : vector<32x256xf32> to vector<16x256xf32>
    %28 = vector.extract_strided_slice %26 {offsets = [16, 0], sizes = [16, 256], strides = [1, 1]} : vector<32x256xf32> to vector<16x256xf32>
    %29 = tpu.concatenate %27, %28 in 1 : vector<16x256xf32>, vector<16x256xf32> -> vector<16x512xf32>
    %30 = vector.extract_strided_slice %29 {offsets = [0, 0], sizes = [8, 512], strides = [1, 1]} : vector<16x512xf32> to vector<8x512xf32>
    %31 = vector.extract_strided_slice %29 {offsets = [8, 0], sizes = [8, 512], strides = [1, 1]} : vector<16x512xf32> to vector<8x512xf32>
    %32 = tpu.concatenate %30, %31 in 1 : vector<8x512xf32>, vector<8x512xf32> -> vector<8x1024xf32>
    %33 = vector.extract_strided_slice %32 {offsets = [0, 0], sizes = [4, 1024], strides = [1, 1]} : vector<8x1024xf32> to vector<4x1024xf32>
    %34 = vector.extract_strided_slice %32 {offsets = [4, 0], sizes = [4, 1024], strides = [1, 1]} : vector<8x1024xf32> to vector<4x1024xf32>
    %35 = tpu.concatenate %33, %34 in 1 : vector<4x1024xf32>, vector<4x1024xf32> -> vector<4x2048xf32>
    %36 = vector.extract_strided_slice %35 {offsets = [0, 0], sizes = [2, 2048], strides = [1, 1]} : vector<4x2048xf32> to vector<2x2048xf32>
    %37 = vector.extract_strided_slice %35 {offsets = [2, 0], sizes = [2, 2048], strides = [1, 1]} : vector<4x2048xf32> to vector<2x2048xf32>
    %38 = tpu.concatenate %36, %37 in 1 : vector<2x2048xf32>, vector<2x2048xf32> -> vector<2x4096xf32>
    %c0_12 = arith.constant 0 : index
    %c0_13 = arith.constant 0 : index
    %39 = vector.load %arg2[%c0_12, %c0_13] : memref<4096x32xbf16, #tpu.memory_space<vmem>>, vector<4096x32xbf16>
    %40 = arith.extf %39 : vector<4096x32xbf16> to vector<4096x32xf32>
    %cst_14 = arith.constant dense<0.000000e+00> : vector<2x32xf32>
    %41 = tpu.matmul %38, %40, %cst_14 {dimension_numbers = #tpu.dot_dimension_numbers<[1], [0], [0], [1], [0, 0, 1, 1], [], []>} : vector<2x4096xf32>, vector<4096x32xf32>, vector<2x32xf32> -> vector<2x32xf32>
    %42 = vector.broadcast %3 : vector<1x32xf32> to vector<2x32xf32>
    %43 = arith.addf %41, %42 : vector<2x32xf32>
    %cst_15 = arith.constant 0.000000e+00 : f32
    %44 = vector.broadcast %cst_15 : f32 to vector<2x32xf32>
    %45 = arith.maximumf %43, %44 : vector<2x32xf32>
    %cst_16 = arith.constant dense<0.000000e+00> : vector<2x6xf32>
    %46 = tpu.matmul %45, %5, %cst_16 {dimension_numbers = #tpu.dot_dimension_numbers<[1], [0], [0], [1], [0, 0, 1, 1], [], []>} : vector<2x32xf32>, vector<32x6xf32>, vector<2x6xf32> -> vector<2x6xf32>
    %47 = vector.broadcast %4 : vector<1x6xf32> to vector<2x6xf32>
    %48 = arith.addf %46, %47 : vector<2x6xf32>
    %cst_17 = arith.constant dense<0xFF800000> : vector<2xf32>
    %49 = vector.multi_reduction <maximumf>, %48, %cst_17 [1] : vector<2x6xf32> to vector<2xf32>
    %50 = vector.shape_cast %49 : vector<2xf32> to vector<2x1xf32>
    %51 = vector.broadcast %50 : vector<2x1xf32> to vector<2x6xf32>
    %52 = arith.subf %48, %51 : vector<2x6xf32>
    %53 = math.exp %52 : vector<2x6xf32>
    %cst_18 = arith.constant dense<0.000000e+00> : vector<2xf32>
    %54 = vector.multi_reduction <add>, %53, %cst_18 [1] : vector<2x6xf32> to vector<2xf32>
    %55 = vector.shape_cast %54 : vector<2xf32> to vector<2x1xf32>
    %56 = vector.broadcast %55 : vector<2x1xf32> to vector<2x6xf32>
    %57 = arith.divf %53, %56 : vector<2x6xf32>
    %c0_19 = arith.constant 0 : index
    %c0_20 = arith.constant 0 : index
    %58 = vector.load %arg3[%c0_19, %c0_20] : memref<2x6xf32, #tpu.memory_space<vmem>>, vector<2x6xf32>
    tpu.vector_store %arg3[%c0_19, %c0_20], %57 {strides = array<i32>} : memref<2x6xf32, #tpu.memory_space<vmem>>, vector<2x6xf32>,
    return
  }
}

</mosaic_0001>

<llo_original>
// kernel: cnn_actor_pallas.1
$region0: #{cnn_actor_pallas.1}
  #allocation0 [shape = 'u32[]', space=smem, size = 0x4, offset = 0x4, fixed_abs, tag = 'smem constant byte address 0x4 - core index']
  #allocation1 [shape = 'u32[72,128]{1,0:T(1,128)}', space=vmem, size = 0x9000, scoped, tag = 'internal scratch']
  %s0 = inlined_call_operand.vmem [shape: f32[130,12], index: 0, kind: input, shape index: {}]
  %s1 = inlined_call_operand.vmem [shape: f32[176,64], index: 1, kind: input, shape index: {}]
  %s2 = inlined_call_operand.vmem [shape: bf16[4096,32], index: 2, kind: input, shape index: {}]
  %s3 = inlined_call_operand.hbm [shape: f32[2,6], index: 3, kind: output, shape index: {}]
  %s4 = sld [smem:[#allocation0]]
  $region22: #{cnn_actor_pallas.1} parent=0
    _
  %s6 = ssub.s32 1, %s4
  %s7 = scalar_select 0, %s6, %s4
  $region1: #{cnn_actor_pallas.1} parent=0
    #allocation2 [shape = 'u8[1024]{0}', space=vmem, size = 0x400, scoped, tag = 'output window, operand 0, single buffered']
    #allocation3 [shape = 's32[1]{0}', space=sflag, size = 0x4, scoped, tag = 'scoped memory for cnn_actor_pallas.1']
    %8 = vsyncpa [#allocation3], 0
    // Predicated region
    $region2: #{cnn_actor_pallas.1} parent=1 // pred_check
      _
    $region3: #{cnn_actor_pallas.1} parent=1 // pred_check_branch
      %10 = sbr.rel (0) target = $region5
    $region4: #{cnn_actor_pallas.1} parent=1 // pred_region
      _
    $region5: #{cnn_actor_pallas.1} parent=1 // pred_fallthru
      _
    // Predicated region
    $region6: #{cnn_actor_pallas.1} parent=1 // pred_check
      _
    $region7: #{cnn_actor_pallas.1} parent=1 // pred_check_branch
      %12 = sbr.rel (0) target = $region9
    $region8: #{cnn_actor_pallas.1} parent=1 // pred_region
      _
    $region9: #{cnn_actor_pallas.1} parent=1 // pred_fallthru
      _
    // Predicated region
    $region10: #{cnn_actor_pallas.1} parent=1 // pred_check
      _
    $region11: #{cnn_actor_pallas.1} parent=1 // pred_check_branch
      %14 = sbr.rel (0) target = $region13
    $region12: #{cnn_actor_pallas.1} parent=1 // pred_region
      _
    $region13: #{cnn_actor_pallas.1} parent=1 // pred_fallthru
      _
    %v15 = vld [vmem:[%s1] sm:$0xff]
    %v16 = vld [vmem:[%s1 + $0x8] sm:$0xf]
    %v17 = vld [vmem:[%s1 + $0xc] sm:$0x1]
    %v18 = vld [vmem:[%s1 + $0xd] sm:$0x1]
    %v19 = vld [vmem:[%s1 + $0xe] sm:$0x1]
    %v20 = vld [vmem:[%s1 + $0xf] sm:$0x1]
    %v21 = vld [vmem:[%s1 + $0x10] sm:$0xff]
    %v22 = vld [vmem:[%s1 + $0x18] sm:$0xff]
    %v23 = vld [vmem:[%s1 + $0x20] sm:$0xff]
    %v24 = vld [vmem:[%s1 + $0x28] sm:$0xff]
    %v25 = vld [vmem:[%s1 + $0x30] sm:$0xff]
    %v26 = vld [vmem:[%s1 + $0x38] sm:$0xff]
    %v27 = vld [vmem:[%s1 + $0x40] sm:$0xff]
    %v28 = vld [vmem:[%s1 + $0x48] sm:$0xff]
    %v29 = vld [vmem:[%s1 + $0x50] sm:$0xff]
    %v30 = vld [vmem:[%s1 + $0x58] sm:$0xff]
    %v31 = vld [vmem:[%s1 + $0x60] sm:$0xff]
    %v32 = vld [vmem:[%s1 + $0x68] sm:$0xff]
    %v33 = vld [vmem:[%s1 + $0x70] sm:$0xff]
    %v34 = vld [vmem:[%s1 + $0x78] sm:$0xff]
    %v35 = vld [vmem:[%s1 + $0x80] sm:$0xff]
    %v36 = vld [vmem:[%s1 + $0x88] sm:$0xff]
    %v37 = vld [vmem:[%s1 + $0x90] sm:$0xff]
    %v38 = vld [vmem:[%s1 + $0x98] sm:$0xff]
    %v39 = vld [vmem:[%s1 + $0xa0] sm:$0xff]
    %v40 = vld [vmem:[%s1 + $0xa8] sm:$0xff]
    %v41 = vld [vmem:[%s0] sm:$0xff]
    %v42 = vld [vmem:[%s0 + $0x8] sm:$0xff]
    %v43 = vld [vmem:[%s0 + $0x10] sm:$0xff]
    %v44 = vld [vmem:[%s0 + $0x18] sm:$0xff]
    %v45 = vld [vmem:[%s0 + $0x20] sm:$0xff]
    %v46 = vld [vmem:[%s0 + $0x28] sm:$0xff]
    %v47 = vld [vmem:[%s0 + $0x30] sm:$0xff]
    %v48 = vld [vmem:[%s0 + $0x38] sm:$0xff]
    %v49 = vld [vmem:[%s0 + $0x40] sm:$0xff]
    %v50 = vld [vmem:[%s0 + $0x48] sm:$0xff]
    %v51 = vld [vmem:[%s0 + $0x50] sm:$0xff]
    %v52 = vld [vmem:[%s0 + $0x58] sm:$0xff]
    %v53 = vld [vmem:[%s0 + $0x60] sm:$0xff]
    %v54 = vld [vmem:[%s0 + $0x68] sm:$0xff]
    %v55 = vld [vmem:[%s0 + $0x70] sm:$0xff]
    %v56 = vld [vmem:[%s0 + $0x78] sm:$0xff]
    %v57 = vld [vmem:[%s0 + $0x80] sm:$0x3]
    %v58 = vperm.slane %v17, 0
    %vm59 = vcmask 97280
    %v61 = vsel %vm59, %v41, 0
    %v64 = vsel %vm59, %v42, 0
    %v67 = vsel %vm59, %v43, 0
    %v70 = vsel %vm59, %v44, 0
    %v73 = vsel %vm59, %v45, 0
    %v76 = vsel %vm59, %v46, 0
    %v79 = vsel %vm59, %v47, 0
    %v82 = vsel %vm59, %v48, 0
    %v85 = vsel %vm59, %v49, 0
    %v88 = vsel %vm59, %v50, 0
    %v91 = vsel %vm59, %v51, 0
    %v94 = vsel %vm59, %v52, 0
    %v97 = vsel %vm59, %v53, 0
    %v100 = vsel %vm59, %v54, 0
    %v103 = vsel %vm59, %v55, 0
    %v106 = vsel %vm59, %v56, 0
    %v109 = vsel %vm59, %v57, 0
    %vm111 = vcmask 1043456
    %v113 = vsel %vm111, %v16, 0
    %115 = vmatpush.msra.mxu0 0.0
    %116 = vmatpush.msra.mxu0 0.0
    %117 = vmatpush.msra.mxu0 0.0
    %118 = vmatpush.msra.mxu0 0.0
    %119 = vmatpush.msra.mxu0 0.0
    %120 = vmatpush.msra.mxu0 0.0
    %121 = vmatpush.msra.mxu0 0.0
    %122 = vmatpush.msra.mxu0 0.0
    %123 = vmatpush.msra.mxu0 0.0
    %124 = vmatpush.msra.mxu0 0.0
    %125 = vmatpush.msra.mxu0 0.0
    %126 = vmatpush.msra.mxu0 0.0
    %127 = vmatpush.msra.mxu0 0.0
    %128 = vmatpush.msra.mxu0 0.0
    %129 = vmatpush.msra.mxu0 %v113
    %130 = vmatpush.msra.mxu0 %v15
    %131 = vmatmul.f32.gmra.mxu0 %v61
    %v132 = vpop.f32.mrf.mxu0
    %v133 = vadd.f32 %v58, %v132
    %134 = vmatmul.f32.gmra.mxu0 %v64
    %v135 = vpop.f32.mrf.mxu0
    %v136 = vadd.f32 %v58, %v135
    %137 = vmatmul.f32.gmra.mxu0 %v67
    %v138 = vpop.f32.mrf.mxu0
    %v139 = vadd.f32 %v58, %v138
    %140 = vmatmul.f32.gmra.mxu0 %v70
    %v141 = vpop.f32.mrf.mxu0
    %v142 = vadd.f32 %v58, %v141
    %143 = vmatmul.f32.gmra.mxu0 %v73
    %v144 = vpop.f32.mrf.mxu0
    %v145 = vadd.f32 %v58, %v144
    %146 = vmatmul.f32.gmra.mxu0 %v76
    %v147 = vpop.f32.mrf.mxu0
    %v148 = vadd.f32 %v58, %v147
    %149 = vmatmul.f32.gmra.mxu0 %v79
    %v150 = vpop.f32.mrf.mxu0
    %v151 = vadd.f32 %v58, %v150
    %152 = vmatmul.f32.gmra.mxu0 %v82
    %v153 = vpop.f32.mrf.mxu0
    %v154 = vadd.f32 %v58, %v153
    %155 = vmatmul.f32.gmra.mxu0 %v85
    %v156 = vpop.f32.mrf.mxu0
    %v157 = vadd.f32 %v58, %v156
    %158 = vmatmul.f32.gmra.mxu0 %v88
    %v159 = vpop.f32.mrf.mxu0
    %v160 = vadd.f32 %v58, %v159
    %161 = vmatmul.f32.gmra.mxu0 %v91
    %v162 = vpop.f32.mrf.mxu0
    %v163 = vadd.f32 %v58, %v162
    %164 = vmatmul.f32.gmra.mxu0 %v94
    %v165 = vpop.f32.mrf.mxu0
    %v166 = vadd.f32 %v58, %v165
    %167 = vmatmul.f32.gmra.mxu0 %v97
    %v168 = vpop.f32.mrf.mxu0
    %v169 = vadd.f32 %v58, %v168
    %170 = vmatmul.f32.gmra.mxu0 %v100
    %v171 = vpop.f32.mrf.mxu0
    %v172 = vadd.f32 %v58, %v171
    %173 = vmatmul.f32.gmra.mxu0 %v103
    %v174 = vpop.f32.mrf.mxu0
    %v175 = vadd.f32 %v58, %v174
    %176 = vmatmul.f32.gmra.mxu0 %v106
    %v177 = vpop.f32.mrf.mxu0
    %v178 = vadd.f32 %v58, %v177
    %179 = vmatmul.f32.gmra.mxu0 %v109
    %v180 = vpop.f32.mrf.mxu0
    %v181 = vadd.f32 %v58, %v180
    %182 = vdwg.mxu0
    %v183 = vmax.f32 %v133, 0.0
    %v184 = vmax.f32 %v136, 0.0
    %v185 = vmax.f32 %v139, 0.0
    %v186 = vmax.f32 %v142, 0.0
    %v187 = vmax.f32 %v145, 0.0
    %v188 = vmax.f32 %v148, 0.0
    %v189 = vmax.f32 %v151, 0.0
    %v190 = vmax.f32 %v154, 0.0
    %v191 = vmax.f32 %v157, 0.0
    %v192 = vmax.f32 %v160, 0.0
    %v193 = vmax.f32 %v163, 0.0
    %v194 = vmax.f32 %v166, 0.0
    %v195 = vmax.f32 %v169, 0.0
    %v196 = vmax.f32 %v172, 0.0
    %v197 = vmax.f32 %v175, 0.0
    %v198 = vmax.f32 %v178, 0.0
    %v199 = vmax.f32 %v181, 0.0
    %vm217 = vcmask 1045504
    %v218 = vrot.slane %v183, 2
    %v219 = vrot.slane %v184, 2
    %v220 = vsel %vm217, %v218, %v219
    %v221 = vrot.slane %v185, 2
    %v222 = vsel %vm217, %v219, %v221
    %v223 = vrot.slane %v186, 2
    %v224 = vsel %vm217, %v221, %v223
    %v225 = vrot.slane %v187, 2
    %v226 = vsel %vm217, %v223, %v225
    %v227 = vrot.slane %v188, 2
    %v228 = vsel %vm217, %v225, %v227
    %v229 = vrot.slane %v189, 2
    %v230 = vsel %vm217, %v227, %v229
    %v231 = vrot.slane %v190, 2
    %v232 = vsel %vm217, %v229, %v231
    %v233 = vrot.slane %v191, 2
    %v234 = vsel %vm217, %v231, %v233
    %v235 = vrot.slane %v192, 2
    %v236 = vsel %vm217, %v233, %v235
    %v237 = vrot.slane %v193, 2
    %v238 = vsel %vm217, %v235, %v237
    %v239 = vrot.slane %v194, 2
    %v240 = vsel %vm217, %v237, %v239
    %v241 = vrot.slane %v195, 2
    %v242 = vsel %vm217, %v239, %v241
    %v243 = vrot.slane %v196, 2
    %v244 = vsel %vm217, %v241, %v243
    %v245 = vrot.slane %v197, 2
    %v246 = vsel %vm217, %v243, %v245
    %v247 = vrot.slane %v198, 2
    %v248 = vsel %vm217, %v245, %v247
    %v249 = vrot.slane %v199, 2
    %v250 = vsel %vm217, %v247, %v249
    %251 = vrot.lane.b32.xlu0 %v220, 64
    %v252 = vpop.permute.xlu0 %251
    %253 = vrot.lane.b32.xlu0 %v222, 64
    %v254 = vpop.permute.xlu0 %253
    %255 = vrot.lane.b32.xlu0 %v224, 64
    %v256 = vpop.permute.xlu0 %255
    %257 = vrot.lane.b32.xlu0 %v226, 64
    %v258 = vpop.permute.xlu0 %257
    %259 = vrot.lane.b32.xlu0 %v228, 64
    %v260 = vpop.permute.xlu0 %259
    %261 = vrot.lane.b32.xlu0 %v230, 64
    %v262 = vpop.permute.xlu0 %261
    %263 = vrot.lane.b32.xlu0 %v232, 64
    %v264 = vpop.permute.xlu0 %263
    %265 = vrot.lane.b32.xlu0 %v234, 64
    %v266 = vpop.permute.xlu0 %265
    %267 = vrot.lane.b32.xlu0 %v236, 64
    %v268 = vpop.permute.xlu0 %267
    %269 = vrot.lane.b32.xlu0 %v238, 64
    %v270 = vpop.permute.xlu0 %269
    %271 = vrot.lane.b32.xlu0 %v240, 64
    %v272 = vpop.permute.xlu0 %271
    %273 = vrot.lane.b32.xlu0 %v242, 64
    %v274 = vpop.permute.xlu0 %273
    %275 = vrot.lane.b32.xlu0 %v244, 64
    %v276 = vpop.permute.xlu0 %275
    %277 = vrot.lane.b32.xlu0 %v246, 64
    %v278 = vpop.permute.xlu0 %277
    %279 = vrot.lane.b32.xlu0 %v248, 64
    %v280 = vpop.permute.xlu0 %279
    %281 = vrot.lane.b32.xlu0 %v250, 64
    %v282 = vpop.permute.xlu0 %281
    %vm299 = vcmask 523264
    %v300 = vsel %vm299, %v183, %v252
    %v301 = vsel %vm299, %v184, %v254
    %v302 = vsel %vm299, %v185, %v256
    %v303 = vsel %vm299, %v186, %v258
    %v304 = vsel %vm299, %v187, %v260
    %v305 = vsel %vm299, %v188, %v262
    %v306 = vsel %vm299, %v189, %v264
    %v307 = vsel %vm299, %v190, %v266
    %v308 = vsel %vm299, %v191, %v268
    %v309 = vsel %vm299, %v192, %v270
    %v310 = vsel %vm299, %v193, %v272
    %v311 = vsel %vm299, %v194, %v274
    %v312 = vsel %vm299, %v195, %v276
    %v313 = vsel %vm299, %v196, %v278
    %v314 = vsel %vm299, %v197, %v280
    %v315 = vsel %vm299, %v198, %v282
    %v316 = vperm.slane %v18, 0
    %317 = vmatpush.msra.mxu0 %v40
    %318 = vmatpush.msra.mxu0 %v39
    %319 = vmatpush.msra.mxu0 %v38
    %320 = vmatpush.msra.mxu0 %v37
    %321 = vmatpush.msra.mxu0 %v36
    %322 = vmatpush.msra.mxu0 %v35
    %323 = vmatpush.msra.mxu0 %v34
    %324 = vmatpush.msra.mxu0 %v33
    %325 = vmatpush.msra.mxu0 %v32
    %326 = vmatpush.msra.mxu0 %v31
    %327 = vmatpush.msra.mxu0 %v30
    %328 = vmatpush.msra.mxu0 %v29
    %329 = vmatpush.msra.mxu0 %v28
    %330 = vmatpush.msra.mxu0 %v27
    %331 = vmatpush.msra.mxu0 %v26
    %332 = vmatpush.msra.mxu0 %v25
    %333 = vmatmul.f32.gmra.mxu0 %v300
    %v334 = vpop.f32.mrf.mxu0
    %v335 = vadd.f32 %v316, %v334
    %336 = vmatmul.f32.gmra.mxu0 %v301
    %v337 = vpop.f32.mrf.mxu0
    %v338 = vadd.f32 %v316, %v337
    %339 = vmatmul.f32.gmra.mxu0 %v302
    %v340 = vpop.f32.mrf.mxu0
    %v341 = vadd.f32 %v316, %v340
    %342 = vmatmul.f32.gmra.mxu0 %v303
    %v343 = vpop.f32.mrf.mxu0
    %v344 = vadd.f32 %v316, %v343
    %345 = vmatmul.f32.gmra.mxu0 %v304
    %v346 = vpop.f32.mrf.mxu0
    %v347 = vadd.f32 %v316, %v346
    %348 = vmatmul.f32.gmra.mxu0 %v305
    %v349 = vpop.f32.mrf.mxu0
    %v350 = vadd.f32 %v316, %v349
    %351 = vmatmul.f32.gmra.mxu0 %v306
    %v352 = vpop.f32.mrf.mxu0
    %v353 = vadd.f32 %v316, %v352
    %354 = vmatmul.f32.gmra.mxu0 %v307
    %v355 = vpop.f32.mrf.mxu0
    %v356 = vadd.f32 %v316, %v355
    %357 = vmatmul.f32.gmra.mxu0 %v308
    %v358 = vpop.f32.mrf.mxu0
    %v359 = vadd.f32 %v316, %v358
    %360 = vmatmul.f32.gmra.mxu0 %v309
    %v361 = vpop.f32.mrf.mxu0
    %v362 = vadd.f32 %v316, %v361
    %363 = vmatmul.f32.gmra.mxu0 %v310
    %v364 = vpop.f32.mrf.mxu0
    %v365 = vadd.f32 %v316, %v364
    %366 = vmatmul.f32.gmra.mxu0 %v311
    %v367 = vpop.f32.mrf.mxu0
    %v368 = vadd.f32 %v316, %v367
    %369 = vmatmul.f32.gmra.mxu0 %v312
    %v370 = vpop.f32.mrf.mxu0
    %v371 = vadd.f32 %v316, %v370
    %372 = vmatmul.f32.gmra.mxu0 %v313
    %v373 = vpop.f32.mrf.mxu0
    %v374 = vadd.f32 %v316, %v373
    %375 = vmatmul.f32.gmra.mxu0 %v314
    %v376 = vpop.f32.mrf.mxu0
    %v377 = vadd.f32 %v316, %v376
    %378 = vmatmul.f32.gmra.mxu0 %v315
    %v379 = vpop.f32.mrf.mxu0
    %v380 = vadd.f32 %v316, %v379
    %381 = vdwg.mxu0
    %v382 = vmax.f32 %v335, 0.0
    %v383 = vmax.f32 %v338, 0.0
    %v384 = vmax.f32 %v341, 0.0
    %v385 = vmax.f32 %v344, 0.0
    %v386 = vmax.f32 %v347, 0.0
    %v387 = vmax.f32 %v350, 0.0
    %v388 = vmax.f32 %v353, 0.0
    %v389 = vmax.f32 %v356, 0.0
    %v390 = vmax.f32 %v359, 0.0
    %v391 = vmax.f32 %v362, 0.0
    %v392 = vmax.f32 %v365, 0.0
    %v393 = vmax.f32 %v368, 0.0
    %v394 = vmax.f32 %v371, 0.0
    %v395 = vmax.f32 %v374, 0.0
    %v396 = vmax.f32 %v377, 0.0
    %v397 = vmax.f32 %v380, 0.0
    %406 = vrot.lane.b32.xlu0 %v390, 64
    %v407 = vpop.permute.xlu0 %406
    %408 = vrot.lane.b32.xlu0 %v391, 64
    %v409 = vpop.permute.xlu0 %408
    %410 = vrot.lane.b32.xlu0 %v392, 64
    %v411 = vpop.permute.xlu0 %410
    %412 = vrot.lane.b32.xlu0 %v393, 64
    %v413 = vpop.permute.xlu0 %412
    %414 = vrot.lane.b32.xlu0 %v394, 64
    %v415 = vpop.permute.xlu0 %414
    %416 = vrot.lane.b32.xlu0 %v395, 64
    %v417 = vpop.permute.xlu0 %416
    %418 = vrot.lane.b32.xlu0 %v396, 64
    %v419 = vpop.permute.xlu0 %418
    %420 = vrot.lane.b32.xlu0 %v397, 64
    %v421 = vpop.permute.xlu0 %420
    %v430 = vsel %vm299, %v382, %v407
    %v431 = vsel %vm299, %v383, %v409
    %v432 = vsel %vm299, %v384, %v411
    %v433 = vsel %vm299, %v385, %v413
    %v434 = vsel %vm299, %v386, %v415
    %v435 = vsel %vm299, %v387, %v417
    %v436 = vsel %vm299, %v388, %v419
    %v437 = vsel %vm299, %v389, %v421
    %v446 = vrot.slane %v430, 4
    %v447 = vrot.slane %v434, 4
    %v448 = vrot.slane %v432, 4
    %v449 = vrot.slane %v436, 4
    %v450 = vrot.slane %v431, 4
    %v451 = vrot.slane %v435, 4
    %v452 = vrot.slane %v433, 4
    %v453 = vrot.slane %v437, 4
    %v462 = vrot.slane %v430, 2
    %v463 = vrot.slane %v434, 2
    %v464 = vrot.slane %v432, 2
    %v465 = vrot.slane %v436, 2
    %v466 = vrot.slane %v431, 2
    %v467 = vrot.slane %v435, 2
    %v468 = vrot.slane %v433, 2
    %v469 = vrot.slane %v437, 2
    %v470 = vrot.slane %v446, 2
    %v471 = vrot.slane %v447, 2
    %v472 = vrot.slane %v448, 2
    %v473 = vrot.slane %v449, 2
    %v474 = vrot.slane %v450, 2
    %v475 = vrot.slane %v451, 2
    %v476 = vrot.slane %v452, 2
    %v477 = vrot.slane %v453, 2
    %v494 = vld [vmem:[%s2] sm:$0xf]
    %v495 = vld [vmem:[%s2 + $0x4] sm:$0xf]
    %v496 = vld [vmem:[%s2 + $0x8] sm:$0xf]
    %v497 = vld [vmem:[%s2 + $0xc] sm:$0xf]
    %v498 = vld [vmem:[%s2 + $0x10] sm:$0xf]
    %v499 = vld [vmem:[%s2 + $0x14] sm:$0xf]
    %v500 = vld [vmem:[%s2 + $0x18] sm:$0xf]
    %v501 = vld [vmem:[%s2 + $0x1c] sm:$0xf]
    %v502 = vld [vmem:[%s2 + $0x20] sm:$0xf]
    %v503 = vld [vmem:[%s2 + $0x24] sm:$0xf]
    %v504 = vld [vmem:[%s2 + $0x28] sm:$0xf]
    %v505 = vld [vmem:[%s2 + $0x2c] sm:$0xf]
    %v506 = vld [vmem:[%s2 + $0x30] sm:$0xf]
    %v507 = vld [vmem:[%s2 + $0x34] sm:$0xf]
    %v508 = vld [vmem:[%s2 + $0x38] sm:$0xf]
    %v509 = vld [vmem:[%s2 + $0x3c] sm:$0xf]
    %v510 = vld [vmem:[%s2 + $0x40] sm:$0xf]
    %v511 = vld [vmem:[%s2 + $0x44] sm:$0xf]
    %v512 = vld [vmem:[%s2 + $0x48] sm:$0xf]
    %v513 = vld [vmem:[%s2 + $0x4c] sm:$0xf]
    %v514 = vld [vmem:[%s2 + $0x50] sm:$0xf]
    %v515 = vld [vmem:[%s2 + $0x54] sm:$0xf]
    %v516 = vld [vmem:[%s2 + $0x58] sm:$0xf]
    %v517 = vld [vmem:[%s2 + $0x5c] sm:$0xf]
    %v518 = vld [vmem:[%s2 + $0x60] sm:$0xf]
    %v519 = vld [vmem:[%s2 + $0x64] sm:$0xf]
    %v520 = vld [vmem:[%s2 + $0x68] sm:$0xf]
    %v521 = vld [vmem:[%s2 + $0x6c] sm:$0xf]
    %v522 = vld [vmem:[%s2 + $0x70] sm:$0xf]
    %v523 = vld [vmem:[%s2 + $0x74] sm:$0xf]
    %v524 = vld [vmem:[%s2 + $0x78] sm:$0xf]
    %v525 = vld [vmem:[%s2 + $0x7c] sm:$0xf]
    %v526 = vld [vmem:[%s2 + $0x80] sm:$0xf]
    %v527 = vld [vmem:[%s2 + $0x84] sm:$0xf]
    %v528 = vld [vmem:[%s2 + $0x88] sm:$0xf]
    %v529 = vld [vmem:[%s2 + $0x8c] sm:$0xf]
    %v530 = vld [vmem:[%s2 + $0x90] sm:$0xf]
    %v531 = vld [vmem:[%s2 + $0x94] sm:$0xf]
    %v532 = vld [vmem:[%s2 + $0x98] sm:$0xf]
    %v533 = vld [vmem:[%s2 + $0x9c] sm:$0xf]
    %v534 = vld [vmem:[%s2 + $0xa0] sm:$0xf]
    %v535 = vld [vmem:[%s2 + $0xa4] sm:$0xf]
    %v536 = vld [vmem:[%s2 + $0xa8] sm:$0xf]
    %v537 = vld [vmem:[%s2 + $0xac] sm:$0xf]
    %v538 = vld [vmem:[%s2 + $0xb0] sm:$0xf]
    %v539 = vld [vmem:[%s2 + $0xb4] sm:$0xf]
    %v540 = vld [vmem:[%s2 + $0xb8] sm:$0xf]
    %v541 = vld [vmem:[%s2 + $0xbc] sm:$0xf]
    %v542 = vld [vmem:[%s2 + $0xc0] sm:$0xf]
    %v543 = vld [vmem:[%s2 + $0xc4] sm:$0xf]
    %v544 = vld [vmem:[%s2 + $0xc8] sm:$0xf]
    %v545 = vld [vmem:[%s2 + $0xcc] sm:$0xf]
    %v546 = vld [vmem:[%s2 + $0xd0] sm:$0xf]
    %v547 = vld [vmem:[%s2 + $0xd4] sm:$0xf]
    %v548 = vld [vmem:[%s2 + $0xd8] sm:$0xf]
    %v549 = vld [vmem:[%s2 + $0xdc] sm:$0xf]
    %v550 = vld [vmem:[%s2 + $0xe0] sm:$0xf]
    %v551 = vld [vmem:[%s2 + $0xe4] sm:$0xf]
    %v552 = vld [vmem:[%s2 + $0xe8] sm:$0xf]
    %v553 = vld [vmem:[%s2 + $0xec] sm:$0xf]
    %v554 = vld [vmem:[%s2 + $0xf0] sm:$0xf]
    %v555 = vld [vmem:[%s2 + $0xf4] sm:$0xf]
    %v556 = vld [vmem:[%s2 + $0xf8] sm:$0xf]
    %v557 = vld [vmem:[%s2 + $0xfc] sm:$0xf]
    %v558 = vld [vmem:[%s2 + $0x100] sm:$0xf]
    %v559 = vld [vmem:[%s2 + $0x104] sm:$0xf]
    %v560 = vld [vmem:[%s2 + $0x108] sm:$0xf]
    %v561 = vld [vmem:[%s2 + $0x10c] sm:$0xf]
    %v562 = vld [vmem:[%s2 + $0x110] sm:$0xf]
    %v563 = vld [vmem:[%s2 + $0x114] sm:$0xf]
    %v564 = vld [vmem:[%s2 + $0x118] sm:$0xf]
    %v565 = vld [vmem:[%s2 + $0x11c] sm:$0xf]
    %v566 = vld [vmem:[%s2 + $0x120] sm:$0xf]
    %v567 = vld [vmem:[%s2 + $0x124] sm:$0xf]
    %v568 = vld [vmem:[%s2 + $0x128] sm:$0xf]
    %v569 = vld [vmem:[%s2 + $0x12c] sm:$0xf]
    %v570 = vld [vmem:[%s2 + $0x130] sm:$0xf]
    %v571 = vld [vmem:[%s2 + $0x134] sm:$0xf]
    %v572 = vld [vmem:[%s2 + $0x138] sm:$0xf]
    %v573 = vld [vmem:[%s2 + $0x13c] sm:$0xf]
    %v574 = vld [vmem:[%s2 + $0x140] sm:$0xf]
    %v575 = vld [vmem:[%s2 + $0x144] sm:$0xf]
    %v576 = vld [vmem:[%s2 + $0x148] sm:$0xf]
    %v577 = vld [vmem:[%s2 + $0x14c] sm:$0xf]
    %v578 = vld [vmem:[%s2 + $0x150] sm:$0xf]
    %v579 = vld [vmem:[%s2 + $0x154] sm:$0xf]
    %v580 = vld [vmem:[%s2 + $0x158] sm:$0xf]
    %v581 = vld [vmem:[%s2 + $0x15c] sm:$0xf]
    %v582 = vld [vmem:[%s2 + $0x160] sm:$0xf]
    %v583 = vld [vmem:[%s2 + $0x164] sm:$0xf]
    %v584 = vld [vmem:[%s2 + $0x168] sm:$0xf]
    %v585 = vld [vmem:[%s2 + $0x16c] sm:$0xf]
    %v586 = vld [vmem:[%s2 + $0x170] sm:$0xf]
    %v587 = vld [vmem:[%s2 + $0x174] sm:$0xf]
    %v588 = vld [vmem:[%s2 + $0x178] sm:$0xf]
    %v589 = vld [vmem:[%s2 + $0x17c] sm:$0xf]
    %v590 = vld [vmem:[%s2 + $0x180] sm:$0xf]
    %v591 = vld [vmem:[%s2 + $0x184] sm:$0xf]
    %v592 = vld [vmem:[%s2 + $0x188] sm:$0xf]
    %v593 = vld [vmem:[%s2 + $0x18c] sm:$0xf]
    %v594 = vld [vmem:[%s2 + $0x190] sm:$0xf]
    %v595 = vld [vmem:[%s2 + $0x194] sm:$0xf]
    %v596 = vld [vmem:[%s2 + $0x198] sm:$0xf]
    %v597 = vld [vmem:[%s2 + $0x19c] sm:$0xf]
    %v598 = vld [vmem:[%s2 + $0x1a0] sm:$0xf]
    %v599 = vld [vmem:[%s2 + $0x1a4] sm:$0xf]
    %v600 = vld [vmem:[%s2 + $0x1a8] sm:$0xf]
    %v601 = vld [vmem:[%s2 + $0x1ac] sm:$0xf]
    %v602 = vld [vmem:[%s2 + $0x1b0] sm:$0xf]
    %v603 = vld [vmem:[%s2 + $0x1b4] sm:$0xf]
    %v604 = vld [vmem:[%s2 + $0x1b8] sm:$0xf]
    %v605 = vld [vmem:[%s2 + $0x1bc] sm:$0xf]
    %v606 = vld [vmem:[%s2 + $0x1c0] sm:$0xf]
    %v607 = vld [vmem:[%s2 + $0x1c4] sm:$0xf]
    %v608 = vld [vmem:[%s2 + $0x1c8] sm:$0xf]
    %v609 = vld [vmem:[%s2 + $0x1cc] sm:$0xf]
    %v610 = vld [vmem:[%s2 + $0x1d0] sm:$0xf]
    %v611 = vld [vmem:[%s2 + $0x1d4] sm:$0xf]
    %v612 = vld [vmem:[%s2 + $0x1d8] sm:$0xf]
    %v613 = vld [vmem:[%s2 + $0x1dc] sm:$0xf]
    %v614 = vld [vmem:[%s2 + $0x1e0] sm:$0xf]
    %v615 = vld [vmem:[%s2 + $0x1e4] sm:$0xf]
    %v616 = vld [vmem:[%s2 + $0x1e8] sm:$0xf]
    %v617 = vld [vmem:[%s2 + $0x1ec] sm:$0xf]
    %v618 = vld [vmem:[%s2 + $0x1f0] sm:$0xf]
    %v619 = vld [vmem:[%s2 + $0x1f4] sm:$0xf]
    %v620 = vld [vmem:[%s2 + $0x1f8] sm:$0xf]
    %v621 = vld [vmem:[%s2 + $0x1fc] sm:$0xf]
    %v622 = vld [vmem:[%s2 + $0x200] sm:$0xf]
    %v623 = vld [vmem:[%s2 + $0x204] sm:$0xf]
    %v624 = vld [vmem:[%s2 + $0x208] sm:$0xf]
    %v625 = vld [vmem:[%s2 + $0x20c] sm:$0xf]
    %v626 = vld [vmem:[%s2 + $0x210] sm:$0xf]
    %v627 = vld [vmem:[%s2 + $0x214] sm:$0xf]
    %v628 = vld [vmem:[%s2 + $0x218] sm:$0xf]
    %v629 = vld [vmem:[%s2 + $0x21c] sm:$0xf]
    %v630 = vld [vmem:[%s2 + $0x220] sm:$0xf]
    %v631 = vld [vmem:[%s2 + $0x224] sm:$0xf]
    %v632 = vld [vmem:[%s2 + $0x228] sm:$0xf]
    %v633 = vld [vmem:[%s2 + $0x22c] sm:$0xf]
    %v634 = vld [vmem:[%s2 + $0x230] sm:$0xf]
    %v635 = vld [vmem:[%s2 + $0x234] sm:$0xf]
    %v636 = vld [vmem:[%s2 + $0x238] sm:$0xf]
    %v637 = vld [vmem:[%s2 + $0x23c] sm:$0xf]
    %v638 = vld [vmem:[%s2 + $0x240] sm:$0xf]
    %v639 = vld [vmem:[%s2 + $0x244] sm:$0xf]
    %v640 = vld [vmem:[%s2 + $0x248] sm:$0xf]
    %v641 = vld [vmem:[%s2 + $0x24c] sm:$0xf]
    %v642 = vld [vmem:[%s2 + $0x250] sm:$0xf]
    %v643 = vld [vmem:[%s2 + $0x254] sm:$0xf]
    %v644 = vld [vmem:[%s2 + $0x258] sm:$0xf]
    %v645 = vld [vmem:[%s2 + $0x25c] sm:$0xf]
    %v646 = vld [vmem:[%s2 + $0x260] sm:$0xf]
    %v647 = vld [vmem:[%s2 + $0x264] sm:$0xf]
    %v648 = vld [vmem:[%s2 + $0x268] sm:$0xf]
    %v649 = vld [vmem:[%s2 + $0x26c] sm:$0xf]
    %v650 = vld [vmem:[%s2 + $0x270] sm:$0xf]
    %v651 = vld [vmem:[%s2 + $0x274] sm:$0xf]
    %v652 = vld [vmem:[%s2 + $0x278] sm:$0xf]
    %v653 = vld [vmem:[%s2 + $0x27c] sm:$0xf]
    %v654 = vld [vmem:[%s2 + $0x280] sm:$0xf]
    %v655 = vld [vmem:[%s2 + $0x284] sm:$0xf]
    %v656 = vld [vmem:[%s2 + $0x288] sm:$0xf]
    %v657 = vld [vmem:[%s2 + $0x28c] sm:$0xf]
    %v658 = vld [vmem:[%s2 + $0x290] sm:$0xf]
    %v659 = vld [vmem:[%s2 + $0x294] sm:$0xf]
    %v660 = vld [vmem:[%s2 + $0x298] sm:$0xf]
    %v661 = vld [vmem:[%s2 + $0x29c] sm:$0xf]
    %v662 = vld [vmem:[%s2 + $0x2a0] sm:$0xf]
    %v663 = vld [vmem:[%s2 + $0x2a4] sm:$0xf]
    %v664 = vld [vmem:[%s2 + $0x2a8] sm:$0xf]
    %v665 = vld [vmem:[%s2 + $0x2ac] sm:$0xf]
    %v666 = vld [vmem:[%s2 + $0x2b0] sm:$0xf]
    %v667 = vld [vmem:[%s2 + $0x2b4] sm:$0xf]
    %v668 = vld [vmem:[%s2 + $0x2b8] sm:$0xf]
    %v669 = vld [vmem:[%s2 + $0x2bc] sm:$0xf]
    %v670 = vld [vmem:[%s2 + $0x2c0] sm:$0xf]
    %v671 = vld [vmem:[%s2 + $0x2c4] sm:$0xf]
    %v672 = vld [vmem:[%s2 + $0x2c8] sm:$0xf]
    %v673 = vld [vmem:[%s2 + $0x2cc] sm:$0xf]
    %v674 = vld [vmem:[%s2 + $0x2d0] sm:$0xf]
    %v675 = vld [vmem:[%s2 + $0x2d4] sm:$0xf]
    %v676 = vld [vmem:[%s2 + $0x2d8] sm:$0xf]
    %v677 = vld [vmem:[%s2 + $0x2dc] sm:$0xf]
    %v678 = vld [vmem:[%s2 + $0x2e0] sm:$0xf]
    %v679 = vld [vmem:[%s2 + $0x2e4] sm:$0xf]
    %v680 = vld [vmem:[%s2 + $0x2e8] sm:$0xf]
    %v681 = vld [vmem:[%s2 + $0x2ec] sm:$0xf]
    %v682 = vld [vmem:[%s2 + $0x2f0] sm:$0xf]
    %v683 = vld [vmem:[%s2 + $0x2f4] sm:$0xf]
    %v684 = vld [vmem:[%s2 + $0x2f8] sm:$0xf]
    %v685 = vld [vmem:[%s2 + $0x2fc] sm:$0xf]
    %v686 = vld [vmem:[%s2 + $0x300] sm:$0xf]
    %v687 = vld [vmem:[%s2 + $0x304] sm:$0xf]
    %v688 = vld [vmem:[%s2 + $0x308] sm:$0xf]
    %v689 = vld [vmem:[%s2 + $0x30c] sm:$0xf]
    %v690 = vld [vmem:[%s2 + $0x310] sm:$0xf]
    %v691 = vld [vmem:[%s2 + $0x314] sm:$0xf]
    %v692 = vld [vmem:[%s2 + $0x318] sm:$0xf]
    %v693 = vld [vmem:[%s2 + $0x31c] sm:$0xf]
    %v694 = vld [vmem:[%s2 + $0x320] sm:$0xf]
    %v695 = vld [vmem:[%s2 + $0x324] sm:$0xf]
    %v696 = vld [vmem:[%s2 + $0x328] sm:$0xf]
    %v697 = vld [vmem:[%s2 + $0x32c] sm:$0xf]
    %v698 = vld [vmem:[%s2 + $0x330] sm:$0xf]
    %v699 = vld [vmem:[%s2 + $0x334] sm:$0xf]
    %v700 = vld [vmem:[%s2 + $0x338] sm:$0xf]
    %v701 = vld [vmem:[%s2 + $0x33c] sm:$0xf]
    %v702 = vld [vmem:[%s2 + $0x340] sm:$0xf]
    %v703 = vld [vmem:[%s2 + $0x344] sm:$0xf]
    %v704 = vld [vmem:[%s2 + $0x348] sm:$0xf]
    %v705 = vld [vmem:[%s2 + $0x34c] sm:$0xf]
    %v706 = vld [vmem:[%s2 + $0x350] sm:$0xf]
    %v707 = vld [vmem:[%s2 + $0x354] sm:$0xf]
    %v708 = vld [vmem:[%s2 + $0x358] sm:$0xf]
    %v709 = vld [vmem:[%s2 + $0x35c] sm:$0xf]
    %v710 = vld [vmem:[%s2 + $0x360] sm:$0xf]
    %v711 = vld [vmem:[%s2 + $0x364] sm:$0xf]
    %v712 = vld [vmem:[%s2 + $0x368] sm:$0xf]
    %v713 = vld [vmem:[%s2 + $0x36c] sm:$0xf]
    %v714 = vld [vmem:[%s2 + $0x370] sm:$0xf]
    %v715 = vld [vmem:[%s2 + $0x374] sm:$0xf]
    %v716 = vld [vmem:[%s2 + $0x378] sm:$0xf]
    %v717 = vld [vmem:[%s2 + $0x37c] sm:$0xf]
    %v718 = vld [vmem:[%s2 + $0x380] sm:$0xf]
    %v719 = vld [vmem:[%s2 + $0x384] sm:$0xf]
    %v720 = vld [vmem:[%s2 + $0x388] sm:$0xf]
    %v721 = vld [vmem:[%s2 + $0x38c] sm:$0xf]
    %v722 = vld [vmem:[%s2 + $0x390] sm:$0xf]
    %v723 = vld [vmem:[%s2 + $0x394] sm:$0xf]
    %v724 = vld [vmem:[%s2 + $0x398] sm:$0xf]
    %v725 = vld [vmem:[%s2 + $0x39c] sm:$0xf]
    %v726 = vld [vmem:[%s2 + $0x3a0] sm:$0xf]
    %v727 = vld [vmem:[%s2 + $0x3a4] sm:$0xf]
    %v728 = vld [vmem:[%s2 + $0x3a8] sm:$0xf]
    %v729 = vld [vmem:[%s2 + $0x3ac] sm:$0xf]
    %v730 = vld [vmem:[%s2 + $0x3b0] sm:$0xf]
    %v731 = vld [vmem:[%s2 + $0x3b4] sm:$0xf]
    %v732 = vld [vmem:[%s2 + $0x3b8] sm:$0xf]
    %v733 = vld [vmem:[%s2 + $0x3bc] sm:$0xf]
    %v734 = vld [vmem:[%s2 + $0x3c0] sm:$0xf]
    %v735 = vld [vmem:[%s2 + $0x3c4] sm:$0xf]
    %v736 = vld [vmem:[%s2 + $0x3c8] sm:$0xf]
    %v737 = vld [vmem:[%s2 + $0x3cc] sm:$0xf]
    %v738 = vld [vmem:[%s2 + $0x3d0] sm:$0xf]
    %v739 = vld [vmem:[%s2 + $0x3d4] sm:$0xf]
    %v740 = vld [vmem:[%s2 + $0x3d8] sm:$0xf]
    %v741 = vld [vmem:[%s2 + $0x3dc] sm:$0xf]
    %v742 = vld [vmem:[%s2 + $0x3e0] sm:$0xf]
    %v743 = vld [vmem:[%s2 + $0x3e4] sm:$0xf]
    %v744 = vld [vmem:[%s2 + $0x3e8] sm:$0xf]
    %v745 = vld [vmem:[%s2 + $0x3ec] sm:$0xf]
    %v746 = vld [vmem:[%s2 + $0x3f0] sm:$0xf]
    %v747 = vld [vmem:[%s2 + $0x3f4] sm:$0xf]
    %v748 = vld [vmem:[%s2 + $0x3f8] sm:$0xf]
    %v749 = vld [vmem:[%s2 + $0x3fc] sm:$0xf]
    %v750 = vld [vmem:[%s2 + $0x400] sm:$0xf]
    %v751 = vld [vmem:[%s2 + $0x404] sm:$0xf]
    %v752 = vld [vmem:[%s2 + $0x408] sm:$0xf]
    %v753 = vld [vmem:[%s2 + $0x40c] sm:$0xf]
    %v754 = vld [vmem:[%s2 + $0x410] sm:$0xf]
    %v755 = vld [vmem:[%s2 + $0x414] sm:$0xf]
    %v756 = vld [vmem:[%s2 + $0x418] sm:$0xf]
    %v757 = vld [vmem:[%s2 + $0x41c] sm:$0xf]
    %v758 = vld [vmem:[%s2 + $0x420] sm:$0xf]
    %v759 = vld [vmem:[%s2 + $0x424] sm:$0xf]
    %v760 = vld [vmem:[%s2 + $0x428] sm:$0xf]
    %v761 = vld [vmem:[%s2 + $0x42c] sm:$0xf]
    %v762 = vld [vmem:[%s2 + $0x430] sm:$0xf]
    %v763 = vld [vmem:[%s2 + $0x434] sm:$0xf]
    %v764 = vld [vmem:[%s2 + $0x438] sm:$0xf]
    %v765 = vld [vmem:[%s2 + $0x43c] sm:$0xf]
    %v766 = vld [vmem:[%s2 + $0x440] sm:$0xf]
    %v767 = vld [vmem:[%s2 + $0x444] sm:$0xf]
    %v768 = vld [vmem:[%s2 + $0x448] sm:$0xf]
    %v769 = vld [vmem:[%s2 + $0x44c] sm:$0xf]
    %v770 = vld [vmem:[%s2 + $0x450] sm:$0xf]
    %v771 = vld [vmem:[%s2 + $0x454] sm:$0xf]
    %v772 = vld [vmem:[%s2 + $0x458] sm:$0xf]
    %v773 = vld [vmem:[%s2 + $0x45c] sm:$0xf]
    %v774 = vld [vmem:[%s2 + $0x460] sm:$0xf]
    %v775 = vld [vmem:[%s2 + $0x464] sm:$0xf]
    %v776 = vld [vmem:[%s2 + $0x468] sm:$0xf]
    %v777 = vld [vmem:[%s2 + $0x46c] sm:$0xf]
    %v778 = vld [vmem:[%s2 + $0x470] sm:$0xf]
    %v779 = vld [vmem:[%s2 + $0x474] sm:$0xf]
    %v780 = vld [vmem:[%s2 + $0x478] sm:$0xf]
    %v781 = vld [vmem:[%s2 + $0x47c] sm:$0xf]
    %v782 = vld [vmem:[%s2 + $0x480] sm:$0xf]
    %v783 = vld [vmem:[%s2 + $0x484] sm:$0xf]
    %v784 = vld [vmem:[%s2 + $0x488] sm:$0xf]
    %v785 = vld [vmem:[%s2 + $0x48c] sm:$0xf]
    %v786 = vld [vmem:[%s2 + $0x490] sm:$0xf]
    %v787 = vld [vmem:[%s2 + $0x494] sm:$0xf]
    %v788 = vld [vmem:[%s2 + $0x498] sm:$0xf]
    %v789 = vld [vmem:[%s2 + $0x49c] sm:$0xf]
    %v790 = vld [vmem:[%s2 + $0x4a0] sm:$0xf]
    %v791 = vld [vmem:[%s2 + $0x4a4] sm:$0xf]
    %v792 = vld [vmem:[%s2 + $0x4a8] sm:$0xf]
    %v793 = vld [vmem:[%s2 + $0x4ac] sm:$0xf]
    %v794 = vld [vmem:[%s2 + $0x4b0] sm:$0xf]
    %v795 = vld [vmem:[%s2 + $0x4b4] sm:$0xf]
    %v796 = vld [vmem:[%s2 + $0x4b8] sm:$0xf]
    %v797 = vld [vmem:[%s2 + $0x4bc] sm:$0xf]
    %v798 = vld [vmem:[%s2 + $0x4c0] sm:$0xf]
    %v799 = vld [vmem:[%s2 + $0x4c4] sm:$0xf]
    %v800 = vld [vmem:[%s2 + $0x4c8] sm:$0xf]
    %v801 = vld [vmem:[%s2 + $0x4cc] sm:$0xf]
    %v802 = vld [vmem:[%s2 + $0x4d0] sm:$0xf]
    %v803 = vld [vmem:[%s2 + $0x4d4] sm:$0xf]
    %v804 = vld [vmem:[%s2 + $0x4d8] sm:$0xf]
    %v805 = vld [vmem:[%s2 + $0x4dc] sm:$0xf]
    %v806 = vld [vmem:[%s2 + $0x4e0] sm:$0xf]
    %v807 = vld [vmem:[%s2 + $0x4e4] sm:$0xf]
    %v808 = vld [vmem:[%s2 + $0x4e8] sm:$0xf]
    %v809 = vld [vmem:[%s2 + $0x4ec] sm:$0xf]
    %v810 = vld [vmem:[%s2 + $0x4f0] sm:$0xf]
    %v811 = vld [vmem:[%s2 + $0x4f4] sm:$0xf]
    %v812 = vld [vmem:[%s2 + $0x4f8] sm:$0xf]
    %v813 = vld [vmem:[%s2 + $0x4fc] sm:$0xf]
    %v814 = vld [vmem:[%s2 + $0x500] sm:$0xf]
    %v815 = vld [vmem:[%s2 + $0x504] sm:$0xf]
    %v816 = vld [vmem:[%s2 + $0x508] sm:$0xf]
    %v817 = vld [vmem:[%s2 + $0x50c] sm:$0xf]
    %v818 = vld [vmem:[%s2 + $0x510] sm:$0xf]
    %v819 = vld [vmem:[%s2 + $0x514] sm:$0xf]
    %v820 = vld [vmem:[%s2 + $0x518] sm:$0xf]
    %v821 = vld [vmem:[%s2 + $0x51c] sm:$0xf]
    %v822 = vld [vmem:[%s2 + $0x520] sm:$0xf]
    %v823 = vld [vmem:[%s2 + $0x524] sm:$0xf]
    %v824 = vld [vmem:[%s2 + $0x528] sm:$0xf]
    %v825 = vld [vmem:[%s2 + $0x52c] sm:$0xf]
    %v826 = vld [vmem:[%s2 + $0x530] sm:$0xf]
    %v827 = vld [vmem:[%s2 + $0x534] sm:$0xf]
    %v828 = vld [vmem:[%s2 + $0x538] sm:$0xf]
    %v829 = vld [vmem:[%s2 + $0x53c] sm:$0xf]
    %v830 = vld [vmem:[%s2 + $0x540] sm:$0xf]
    %v831 = vld [vmem:[%s2 + $0x544] sm:$0xf]
    %v832 = vld [vmem:[%s2 + $0x548] sm:$0xf]
    %v833 = vld [vmem:[%s2 + $0x54c] sm:$0xf]
    %v834 = vld [vmem:[%s2 + $0x550] sm:$0xf]
    %v835 = vld [vmem:[%s2 + $0x554] sm:$0xf]
    %v836 = vld [vmem:[%s2 + $0x558] sm:$0xf]
    %v837 = vld [vmem:[%s2 + $0x55c] sm:$0xf]
    %v838 = vld [vmem:[%s2 + $0x560] sm:$0xf]
    %v839 = vld [vmem:[%s2 + $0x564] sm:$0xf]
    %v840 = vld [vmem:[%s2 + $0x568] sm:$0xf]
    %v841 = vld [vmem:[%s2 + $0x56c] sm:$0xf]
    %v842 = vld [vmem:[%s2 + $0x570] sm:$0xf]
    %v843 = vld [vmem:[%s2 + $0x574] sm:$0xf]
    %v844 = vld [vmem:[%s2 + $0x578] sm:$0xf]
    %v845 = vld [vmem:[%s2 + $0x57c] sm:$0xf]
    %v846 = vld [vmem:[%s2 + $0x580] sm:$0xf]
    %v847 = vld [vmem:[%s2 + $0x584] sm:$0xf]
    %v848 = vld [vmem:[%s2 + $0x588] sm:$0xf]
    %v849 = vld [vmem:[%s2 + $0x58c] sm:$0xf]
    %v850 = vld [vmem:[%s2 + $0x590] sm:$0xf]
    %v851 = vld [vmem:[%s2 + $0x594] sm:$0xf]
    %v852 = vld [vmem:[%s2 + $0x598] sm:$0xf]
    %v853 = vld [vmem:[%s2 + $0x59c] sm:$0xf]
    %v854 = vld [vmem:[%s2 + $0x5a0] sm:$0xf]
    %v855 = vld [vmem:[%s2 + $0x5a4] sm:$0xf]
    %v856 = vld [vmem:[%s2 + $0x5a8] sm:$0xf]
    %v857 = vld [vmem:[%s2 + $0x5ac] sm:$0xf]
    %v858 = vld [vmem:[%s2 + $0x5b0] sm:$0xf]
    %v859 = vld [vmem:[%s2 + $0x5b4] sm:$0xf]
    %v860 = vld [vmem:[%s2 + $0x5b8] sm:$0xf]
    %v861 = vld [vmem:[%s2 + $0x5bc] sm:$0xf]
    %v862 = vld [vmem:[%s2 + $0x5c0] sm:$0xf]
    %v863 = vld [vmem:[%s2 + $0x5c4] sm:$0xf]
    %v864 = vld [vmem:[%s2 + $0x5c8] sm:$0xf]
    %v865 = vld [vmem:[%s2 + $0x5cc] sm:$0xf]
    %v866 = vld [vmem:[%s2 + $0x5d0] sm:$0xf]
    %v867 = vld [vmem:[%s2 + $0x5d4] sm:$0xf]
    %v868 = vld [vmem:[%s2 + $0x5d8] sm:$0xf]
    %v869 = vld [vmem:[%s2 + $0x5dc] sm:$0xf]
    %v870 = vld [vmem:[%s2 + $0x5e0] sm:$0xf]
    %v871 = vld [vmem:[%s2 + $0x5e4] sm:$0xf]
    %v872 = vld [vmem:[%s2 + $0x5e8] sm:$0xf]
    %v873 = vld [vmem:[%s2 + $0x5ec] sm:$0xf]
    %v874 = vld [vmem:[%s2 + $0x5f0] sm:$0xf]
    %v875 = vld [vmem:[%s2 + $0x5f4] sm:$0xf]
    %v876 = vld [vmem:[%s2 + $0x5f8] sm:$0xf]
    %v877 = vld [vmem:[%s2 + $0x5fc] sm:$0xf]
    %v878 = vld [vmem:[%s2 + $0x600] sm:$0xf]
    %v879 = vld [vmem:[%s2 + $0x604] sm:$0xf]
    %v880 = vld [vmem:[%s2 + $0x608] sm:$0xf]
    %v881 = vld [vmem:[%s2 + $0x60c] sm:$0xf]
    %v882 = vld [vmem:[%s2 + $0x610] sm:$0xf]
    %v883 = vld [vmem:[%s2 + $0x614] sm:$0xf]
    %v884 = vld [vmem:[%s2 + $0x618] sm:$0xf]
    %v885 = vld [vmem:[%s2 + $0x61c] sm:$0xf]
    %v886 = vld [vmem:[%s2 + $0x620] sm:$0xf]
    %v887 = vld [vmem:[%s2 + $0x624] sm:$0xf]
    %v888 = vld [vmem:[%s2 + $0x628] sm:$0xf]
    %v889 = vld [vmem:[%s2 + $0x62c] sm:$0xf]
    %v890 = vld [vmem:[%s2 + $0x630] sm:$0xf]
    %v891 = vld [vmem:[%s2 + $0x634] sm:$0xf]
    %v892 = vld [vmem:[%s2 + $0x638] sm:$0xf]
    %v893 = vld [vmem:[%s2 + $0x63c] sm:$0xf]
    %v894 = vld [vmem:[%s2 + $0x640] sm:$0xf]
    %v895 = vld [vmem:[%s2 + $0x644] sm:$0xf]
    %v896 = vld [vmem:[%s2 + $0x648] sm:$0xf]
    %v897 = vld [vmem:[%s2 + $0x64c] sm:$0xf]
    %v898 = vld [vmem:[%s2 + $0x650] sm:$0xf]
    %v899 = vld [vmem:[%s2 + $0x654] sm:$0xf]
    %v900 = vld [vmem:[%s2 + $0x658] sm:$0xf]
    %v901 = vld [vmem:[%s2 + $0x65c] sm:$0xf]
    %v902 = vld [vmem:[%s2 + $0x660] sm:$0xf]
    %v903 = vld [vmem:[%s2 + $0x664] sm:$0xf]
    %v904 = vld [vmem:[%s2 + $0x668] sm:$0xf]
    %v905 = vld [vmem:[%s2 + $0x66c] sm:$0xf]
    %v906 = vld [vmem:[%s2 + $0x670] sm:$0xf]
    %v907 = vld [vmem:[%s2 + $0x674] sm:$0xf]
    %v908 = vld [vmem:[%s2 + $0x678] sm:$0xf]
    %v909 = vld [vmem:[%s2 + $0x67c] sm:$0xf]
    %v910 = vld [vmem:[%s2 + $0x680] sm:$0xf]
    %v911 = vld [vmem:[%s2 + $0x684] sm:$0xf]
    %v912 = vld [vmem:[%s2 + $0x688] sm:$0xf]
    %v913 = vld [vmem:[%s2 + $0x68c] sm:$0xf]
    %v914 = vld [vmem:[%s2 + $0x690] sm:$0xf]
    %v915 = vld [vmem:[%s2 + $0x694] sm:$0xf]
    %v916 = vld [vmem:[%s2 + $0x698] sm:$0xf]
    %v917 = vld [vmem:[%s2 + $0x69c] sm:$0xf]
    %v918 = vld [vmem:[%s2 + $0x6a0] sm:$0xf]
    %v919 = vld [vmem:[%s2 + $0x6a4] sm:$0xf]
    %v920 = vld [vmem:[%s2 + $0x6a8] sm:$0xf]
    %v921 = vld [vmem:[%s2 + $0x6ac] sm:$0xf]
    %v922 = vld [vmem:[%s2 + $0x6b0] sm:$0xf]
    %v923 = vld [vmem:[%s2 + $0x6b4] sm:$0xf]
    %v924 = vld [vmem:[%s2 + $0x6b8] sm:$0xf]
    %v925 = vld [vmem:[%s2 + $0x6bc] sm:$0xf]
    %v926 = vld [vmem:[%s2 + $0x6c0] sm:$0xf]
    %v927 = vld [vmem:[%s2 + $0x6c4] sm:$0xf]
    %v928 = vld [vmem:[%s2 + $0x6c8] sm:$0xf]
    %v929 = vld [vmem:[%s2 + $0x6cc] sm:$0xf]
    %v930 = vld [vmem:[%s2 + $0x6d0] sm:$0xf]
    %v931 = vld [vmem:[%s2 + $0x6d4] sm:$0xf]
    %v932 = vld [vmem:[%s2 + $0x6d8] sm:$0xf]
    %v933 = vld [vmem:[%s2 + $0x6dc] sm:$0xf]
    %v934 = vld [vmem:[%s2 + $0x6e0] sm:$0xf]
    %v935 = vld [vmem:[%s2 + $0x6e4] sm:$0xf]
    %v936 = vld [vmem:[%s2 + $0x6e8] sm:$0xf]
    %v937 = vld [vmem:[%s2 + $0x6ec] sm:$0xf]
    %v938 = vld [vmem:[%s2 + $0x6f0] sm:$0xf]
    %v939 = vld [vmem:[%s2 + $0x6f4] sm:$0xf]
    %v940 = vld [vmem:[%s2 + $0x6f8] sm:$0xf]
    %v941 = vld [vmem:[%s2 + $0x6fc] sm:$0xf]
    %v942 = vld [vmem:[%s2 + $0x700] sm:$0xf]
    %v943 = vld [vmem:[%s2 + $0x704] sm:$0xf]
    %v944 = vld [vmem:[%s2 + $0x708] sm:$0xf]
    %v945 = vld [vmem:[%s2 + $0x70c] sm:$0xf]
    %v946 = vld [vmem:[%s2 + $0x710] sm:$0xf]
    %v947 = vld [vmem:[%s2 + $0x714] sm:$0xf]
    %v948 = vld [vmem:[%s2 + $0x718] sm:$0xf]
    %v949 = vld [vmem:[%s2 + $0x71c] sm:$0xf]
    %v950 = vld [vmem:[%s2 + $0x720] sm:$0xf]
    %v951 = vld [vmem:[%s2 + $0x724] sm:$0xf]
    %v952 = vld [vmem:[%s2 + $0x728] sm:$0xf]
    %v953 = vld [vmem:[%s2 + $0x72c] sm:$0xf]
    %v954 = vld [vmem:[%s2 + $0x730] sm:$0xf]
    %v955 = vld [vmem:[%s2 + $0x734] sm:$0xf]
    %v956 = vld [vmem:[%s2 + $0x738] sm:$0xf]
    %v957 = vld [vmem:[%s2 + $0x73c] sm:$0xf]
    %v958 = vld [vmem:[%s2 + $0x740] sm:$0xf]
    %v959 = vld [vmem:[%s2 + $0x744] sm:$0xf]
    %v960 = vld [vmem:[%s2 + $0x748] sm:$0xf]
    %v961 = vld [vmem:[%s2 + $0x74c] sm:$0xf]
    %v962 = vld [vmem:[%s2 + $0x750] sm:$0xf]
    %v963 = vld [vmem:[%s2 + $0x754] sm:$0xf]
    %v964 = vld [vmem:[%s2 + $0x758] sm:$0xf]
    %v965 = vld [vmem:[%s2 + $0x75c] sm:$0xf]
    %v966 = vld [vmem:[%s2 + $0x760] sm:$0xf]
    %v967 = vld [vmem:[%s2 + $0x764] sm:$0xf]
    %v968 = vld [vmem:[%s2 + $0x768] sm:$0xf]
    %v969 = vld [vmem:[%s2 + $0x76c] sm:$0xf]
    %v970 = vld [vmem:[%s2 + $0x770] sm:$0xf]
    %v971 = vld [vmem:[%s2 + $0x774] sm:$0xf]
    %v972 = vld [vmem:[%s2 + $0x778] sm:$0xf]
    %v973 = vld [vmem:[%s2 + $0x77c] sm:$0xf]
    %v974 = vld [vmem:[%s2 + $0x780] sm:$0xf]
    %v975 = vld [vmem:[%s2 + $0x784] sm:$0xf]
    %v976 = vld [vmem:[%s2 + $0x788] sm:$0xf]
    %v977 = vld [vmem:[%s2 + $0x78c] sm:$0xf]
    %v978 = vld [vmem:[%s2 + $0x790] sm:$0xf]
    %v979 = vld [vmem:[%s2 + $0x794] sm:$0xf]
    %v980 = vld [vmem:[%s2 + $0x798] sm:$0xf]
    %v981 = vld [vmem:[%s2 + $0x79c] sm:$0xf]
    %v982 = vld [vmem:[%s2 + $0x7a0] sm:$0xf]
    %v983 = vld [vmem:[%s2 + $0x7a4] sm:$0xf]
    %v984 = vld [vmem:[%s2 + $0x7a8] sm:$0xf]
    %v985 = vld [vmem:[%s2 + $0x7ac] sm:$0xf]
    %v986 = vld [vmem:[%s2 + $0x7b0] sm:$0xf]
    %v987 = vld [vmem:[%s2 + $0x7b4] sm:$0xf]
    %v988 = vld [vmem:[%s2 + $0x7b8] sm:$0xf]
    %v989 = vld [vmem:[%s2 + $0x7bc] sm:$0xf]
    %v990 = vld [vmem:[%s2 + $0x7c0] sm:$0xf]
    %v991 = vld [vmem:[%s2 + $0x7c4] sm:$0xf]
    %v992 = vld [vmem:[%s2 + $0x7c8] sm:$0xf]
    %v993 = vld [vmem:[%s2 + $0x7cc] sm:$0xf]
    %v994 = vld [vmem:[%s2 + $0x7d0] sm:$0xf]
    %v995 = vld [vmem:[%s2 + $0x7d4] sm:$0xf]
    %v996 = vld [vmem:[%s2 + $0x7d8] sm:$0xf]
    %v997 = vld [vmem:[%s2 + $0x7dc] sm:$0xf]
    %v998 = vld [vmem:[%s2 + $0x7e0] sm:$0xf]
    %v999 = vld [vmem:[%s2 + $0x7e4] sm:$0xf]
    %v1000 = vld [vmem:[%s2 + $0x7e8] sm:$0xf]
    %v1001 = vld [vmem:[%s2 + $0x7ec] sm:$0xf]
    %v1002 = vld [vmem:[%s2 + $0x7f0] sm:$0xf]
    %v1003 = vld [vmem:[%s2 + $0x7f4] sm:$0xf]
    %v1004 = vld [vmem:[%s2 + $0x7f8] sm:$0xf]
    %v1005 = vld [vmem:[%s2 + $0x7fc] sm:$0xf]
    %v1006 = vunpack.c.l.bf16 %v494
    %v1007 = vunpack.c.l.bf16 %v495
    %v1008 = vunpack.c.l.bf16 %v496
    %v1009 = vunpack.c.l.bf16 %v497
    %v1010 = vunpack.c.l.bf16 %v498
    %v1011 = vunpack.c.l.bf16 %v499
    %v1012 = vunpack.c.l.bf16 %v500
    %v1013 = vunpack.c.l.bf16 %v501
    %v1014 = vunpack.c.l.bf16 %v502
    %v1015 = vunpack.c.l.bf16 %v503
    %v1016 = vunpack.c.l.bf16 %v504
    %v1017 = vunpack.c.l.bf16 %v505
    %v1018 = vunpack.c.l.bf16 %v506
    %v1019 = vunpack.c.l.bf16 %v507
    %v1020 = vunpack.c.l.bf16 %v508
    %v1021 = vunpack.c.l.bf16 %v509
    %v1022 = vunpack.c.l.bf16 %v510
    %v1023 = vunpack.c.l.bf16 %v511
    %v1024 = vunpack.c.l.bf16 %v512
    %v1025 = vunpack.c.l.bf16 %v513
    %v1026 = vunpack.c.l.bf16 %v514
    %v1027 = vunpack.c.l.bf16 %v515
    %v1028 = vunpack.c.l.bf16 %v516
    %v1029 = vunpack.c.l.bf16 %v517
    %v1030 = vunpack.c.l.bf16 %v518
    %v1031 = vunpack.c.l.bf16 %v519
    %v1032 = vunpack.c.l.bf16 %v520
    %v1033 = vunpack.c.l.bf16 %v521
    %v1034 = vunpack.c.l.bf16 %v522
    %v1035 = vunpack.c.l.bf16 %v523
    %v1036 = vunpack.c.l.bf16 %v524
    %v1037 = vunpack.c.l.bf16 %v525
    %v1038 = vunpack.c.l.bf16 %v526
    %v1039 = vunpack.c.l.bf16 %v527
    %v1040 = vunpack.c.l.bf16 %v528
    %v1041 = vunpack.c.l.bf16 %v529
    %v1042 = vunpack.c.l.bf16 %v530
    %v1043 = vunpack.c.l.bf16 %v531
    %v1044 = vunpack.c.l.bf16 %v532
    %v1045 = vunpack.c.l.bf16 %v533
    %v1046 = vunpack.c.l.bf16 %v534
    %v1047 = vunpack.c.l.bf16 %v535
    %v1048 = vunpack.c.l.bf16 %v536
    %v1049 = vunpack.c.l.bf16 %v537
    %v1050 = vunpack.c.l.bf16 %v538
    %v1051 = vunpack.c.l.bf16 %v539
    %v1052 = vunpack.c.l.bf16 %v540
    %v1053 = vunpack.c.l.bf16 %v541
    %v1054 = vunpack.c.l.bf16 %v542
    %v1055 = vunpack.c.l.bf16 %v543
    %v1056 = vunpack.c.l.bf16 %v544
    %v1057 = vunpack.c.l.bf16 %v545
    %v1058 = vunpack.c.l.bf16 %v546
    %v1059 = vunpack.c.l.bf16 %v547
    %v1060 = vunpack.c.l.bf16 %v548
    %v1061 = vunpack.c.l.bf16 %v549
    %v1062 = vunpack.c.l.bf16 %v550
    %v1063 = vunpack.c.l.bf16 %v551
    %v1064 = vunpack.c.l.bf16 %v552
    %v1065 = vunpack.c.l.bf16 %v553
    %v1066 = vunpack.c.l.bf16 %v554
    %v1067 = vunpack.c.l.bf16 %v555
    %v1068 = vunpack.c.l.bf16 %v556
    %v1069 = vunpack.c.l.bf16 %v557
    %v1070 = vunpack.c.l.bf16 %v558
    %v1071 = vunpack.c.l.bf16 %v559
    %v1072 = vunpack.c.l.bf16 %v560
    %v1073 = vunpack.c.l.bf16 %v561
    %v1074 = vunpack.c.l.bf16 %v562
    %v1075 = vunpack.c.l.bf16 %v563
    %v1076 = vunpack.c.l.bf16 %v564
    %v1077 = vunpack.c.l.bf16 %v565
    %v1078 = vunpack.c.l.bf16 %v566
    %v1079 = vunpack.c.l.bf16 %v567
    %v1080 = vunpack.c.l.bf16 %v568
    %v1081 = vunpack.c.l.bf16 %v569
    %v1082 = vunpack.c.l.bf16 %v570
    %v1083 = vunpack.c.l.bf16 %v571
    %v1084 = vunpack.c.l.bf16 %v572
    %v1085 = vunpack.c.l.bf16 %v573
    %v1086 = vunpack.c.l.bf16 %v574
    %v1087 = vunpack.c.l.bf16 %v575
    %v1088 = vunpack.c.l.bf16 %v576
    %v1089 = vunpack.c.l.bf16 %v577
    %v1090 = vunpack.c.l.bf16 %v578
    %v1091 = vunpack.c.l.bf16 %v579
    %v1092 = vunpack.c.l.bf16 %v580
    %v1093 = vunpack.c.l.bf16 %v581
    %v1094 = vunpack.c.l.bf16 %v582
    %v1095 = vunpack.c.l.bf16 %v583
    %v1096 = vunpack.c.l.bf16 %v584
    %v1097 = vunpack.c.l.bf16 %v585
    %v1098 = vunpack.c.l.bf16 %v586
    %v1099 = vunpack.c.l.bf16 %v587
    %v1100 = vunpack.c.l.bf16 %v588
    %v1101 = vunpack.c.l.bf16 %v589
    %v1102 = vunpack.c.l.bf16 %v590
    %v1103 = vunpack.c.l.bf16 %v591
    %v1104 = vunpack.c.l.bf16 %v592
    %v1105 = vunpack.c.l.bf16 %v593
    %v1106 = vunpack.c.l.bf16 %v594
    %v1107 = vunpack.c.l.bf16 %v595
    %v1108 = vunpack.c.l.bf16 %v596
    %v1109 = vunpack.c.l.bf16 %v597
    %v1110 = vunpack.c.l.bf16 %v598
    %v1111 = vunpack.c.l.bf16 %v599
    %v1112 = vunpack.c.l.bf16 %v600
    %v1113 = vunpack.c.l.bf16 %v601
    %v1114 = vunpack.c.l.bf16 %v602
    %v1115 = vunpack.c.l.bf16 %v603
    %v1116 = vunpack.c.l.bf16 %v604
    %v1117 = vunpack.c.l.bf16 %v605
    %v1118 = vunpack.c.l.bf16 %v606
    %v1119 = vunpack.c.l.bf16 %v607
    %v1120 = vunpack.c.l.bf16 %v608
    %v1121 = vunpack.c.l.bf16 %v609
    %v1122 = vunpack.c.l.bf16 %v610
    %v1123 = vunpack.c.l.bf16 %v611
    %v1124 = vunpack.c.l.bf16 %v612
    %v1125 = vunpack.c.l.bf16 %v613
    %v1126 = vunpack.c.l.bf16 %v614
    %v1127 = vunpack.c.l.bf16 %v615
    %v1128 = vunpack.c.l.bf16 %v616
    %v1129 = vunpack.c.l.bf16 %v617
    %v1130 = vunpack.c.l.bf16 %v618
    %v1131 = vunpack.c.l.bf16 %v619
    %v1132 = vunpack.c.l.bf16 %v620
    %v1133 = vunpack.c.l.bf16 %v621
    %v1134 = vunpack.c.l.bf16 %v622
    %v1135 = vunpack.c.l.bf16 %v623
    %v1136 = vunpack.c.l.bf16 %v624
    %v1137 = vunpack.c.l.bf16 %v625
    %v1138 = vunpack.c.l.bf16 %v626
    %v1139 = vunpack.c.l.bf16 %v627
    %v1140 = vunpack.c.l.bf16 %v628
    %v1141 = vunpack.c.l.bf16 %v629
    %v1142 = vunpack.c.l.bf16 %v630
    %v1143 = vunpack.c.l.bf16 %v631
    %v1144 = vunpack.c.l.bf16 %v632
    %v1145 = vunpack.c.l.bf16 %v633
    %v1146 = vunpack.c.l.bf16 %v634
    %v1147 = vunpack.c.l.bf16 %v635
    %v1148 = vunpack.c.l.bf16 %v636
    %v1149 = vunpack.c.l.bf16 %v637
    %v1150 = vunpack.c.l.bf16 %v638
    %v1151 = vunpack.c.l.bf16 %v639
    %v1152 = vunpack.c.l.bf16 %v640
    %v1153 = vunpack.c.l.bf16 %v641
    %v1154 = vunpack.c.l.bf16 %v642
    %v1155 = vunpack.c.l.bf16 %v643
    %v1156 = vunpack.c.l.bf16 %v644
    %v1157 = vunpack.c.l.bf16 %v645
    %v1158 = vunpack.c.l.bf16 %v646
    %v1159 = vunpack.c.l.bf16 %v647
    %v1160 = vunpack.c.l.bf16 %v648
    %v1161 = vunpack.c.l.bf16 %v649
    %v1162 = vunpack.c.l.bf16 %v650
    %v1163 = vunpack.c.l.bf16 %v651
    %v1164 = vunpack.c.l.bf16 %v652
    %v1165 = vunpack.c.l.bf16 %v653
    %v1166 = vunpack.c.l.bf16 %v654
    %v1167 = vunpack.c.l.bf16 %v655
    %v1168 = vunpack.c.l.bf16 %v656
    %v1169 = vunpack.c.l.bf16 %v657
    %v1170 = vunpack.c.l.bf16 %v658
    %v1171 = vunpack.c.l.bf16 %v659
    %v1172 = vunpack.c.l.bf16 %v660
    %v1173 = vunpack.c.l.bf16 %v661
    %v1174 = vunpack.c.l.bf16 %v662
    %v1175 = vunpack.c.l.bf16 %v663
    %v1176 = vunpack.c.l.bf16 %v664
    %v1177 = vunpack.c.l.bf16 %v665
    %v1178 = vunpack.c.l.bf16 %v666
    %v1179 = vunpack.c.l.bf16 %v667
    %v1180 = vunpack.c.l.bf16 %v668
    %v1181 = vunpack.c.l.bf16 %v669
    %v1182 = vunpack.c.l.bf16 %v670
    %v1183 = vunpack.c.l.bf16 %v671
    %v1184 = vunpack.c.l.bf16 %v672
    %v1185 = vunpack.c.l.bf16 %v673
    %v1186 = vunpack.c.l.bf16 %v674
    %v1187 = vunpack.c.l.bf16 %v675
    %v1188 = vunpack.c.l.bf16 %v676
    %v1189 = vunpack.c.l.bf16 %v677
    %v1190 = vunpack.c.l.bf16 %v678
    %v1191 = vunpack.c.l.bf16 %v679
    %v1192 = vunpack.c.l.bf16 %v680
    %v1193 = vunpack.c.l.bf16 %v681
    %v1194 = vunpack.c.l.bf16 %v682
    %v1195 = vunpack.c.l.bf16 %v683
    %v1196 = vunpack.c.l.bf16 %v684
    %v1197 = vunpack.c.l.bf16 %v685
    %v1198 = vunpack.c.l.bf16 %v686
    %v1199 = vunpack.c.l.bf16 %v687
    %v1200 = vunpack.c.l.bf16 %v688
    %v1201 = vunpack.c.l.bf16 %v689
    %v1202 = vunpack.c.l.bf16 %v690
    %v1203 = vunpack.c.l.bf16 %v691
    %v1204 = vunpack.c.l.bf16 %v692
    %v1205 = vunpack.c.l.bf16 %v693
    %v1206 = vunpack.c.l.bf16 %v694
    %v1207 = vunpack.c.l.bf16 %v695
    %v1208 = vunpack.c.l.bf16 %v696
    %v1209 = vunpack.c.l.bf16 %v697
    %v1210 = vunpack.c.l.bf16 %v698
    %v1211 = vunpack.c.l.bf16 %v699
    %v1212 = vunpack.c.l.bf16 %v700
    %v1213 = vunpack.c.l.bf16 %v701
    %v1214 = vunpack.c.l.bf16 %v702
    %v1215 = vunpack.c.l.bf16 %v703
    %v1216 = vunpack.c.l.bf16 %v704
    %v1217 = vunpack.c.l.bf16 %v705
    %v1218 = vunpack.c.l.bf16 %v706
    %v1219 = vunpack.c.l.bf16 %v707
    %v1220 = vunpack.c.l.bf16 %v708
    %v1221 = vunpack.c.l.bf16 %v709
    %v1222 = vunpack.c.l.bf16 %v710
    %v1223 = vunpack.c.l.bf16 %v711
    %v1224 = vunpack.c.l.bf16 %v712
    %v1225 = vunpack.c.l.bf16 %v713
    %v1226 = vunpack.c.l.bf16 %v714
    %v1227 = vunpack.c.l.bf16 %v715
    %v1228 = vunpack.c.l.bf16 %v716
    %v1229 = vunpack.c.l.bf16 %v717
    %v1230 = vunpack.c.l.bf16 %v718
    %v1231 = vunpack.c.l.bf16 %v719
    %v1232 = vunpack.c.l.bf16 %v720
    %v1233 = vunpack.c.l.bf16 %v721
    %v1234 = vunpack.c.l.bf16 %v722
    %v1235 = vunpack.c.l.bf16 %v723
    %v1236 = vunpack.c.l.bf16 %v724
    %v1237 = vunpack.c.l.bf16 %v725
    %v1238 = vunpack.c.l.bf16 %v726
    %v1239 = vunpack.c.l.bf16 %v727
    %v1240 = vunpack.c.l.bf16 %v728
    %v1241 = vunpack.c.l.bf16 %v729
    %v1242 = vunpack.c.l.bf16 %v730
    %v1243 = vunpack.c.l.bf16 %v731
    %v1244 = vunpack.c.l.bf16 %v732
    %v1245 = vunpack.c.l.bf16 %v733
    %v1246 = vunpack.c.l.bf16 %v734
    %v1247 = vunpack.c.l.bf16 %v735
    %v1248 = vunpack.c.l.bf16 %v736
    %v1249 = vunpack.c.l.bf16 %v737
    %v1250 = vunpack.c.l.bf16 %v738
    %v1251 = vunpack.c.l.bf16 %v739
    %v1252 = vunpack.c.l.bf16 %v740
    %v1253 = vunpack.c.l.bf16 %v741
    %v1254 = vunpack.c.l.bf16 %v742
    %v1255 = vunpack.c.l.bf16 %v743
    %v1256 = vunpack.c.l.bf16 %v744
    %v1257 = vunpack.c.l.bf16 %v745
    %v1258 = vunpack.c.l.bf16 %v746
    %v1259 = vunpack.c.l.bf16 %v747
    %v1260 = vunpack.c.l.bf16 %v748
    %v1261 = vunpack.c.l.bf16 %v749
    %v1262 = vunpack.c.l.bf16 %v750
    %v1263 = vunpack.c.l.bf16 %v751
    %v1264 = vunpack.c.l.bf16 %v752
    %v1265 = vunpack.c.l.bf16 %v753
    %v1266 = vunpack.c.l.bf16 %v754
    %v1267 = vunpack.c.l.bf16 %v755
    %v1268 = vunpack.c.l.bf16 %v756
    %v1269 = vunpack.c.l.bf16 %v757
    %v1270 = vunpack.c.l.bf16 %v758
    %v1271 = vunpack.c.l.bf16 %v759
    %v1272 = vunpack.c.l.bf16 %v760
    %v1273 = vunpack.c.l.bf16 %v761
    %v1274 = vunpack.c.l.bf16 %v762
    %v1275 = vunpack.c.l.bf16 %v763
    %v1276 = vunpack.c.l.bf16 %v764
    %v1277 = vunpack.c.l.bf16 %v765
    %v1278 = vunpack.c.l.bf16 %v766
    %v1279 = vunpack.c.l.bf16 %v767
    %v1280 = vunpack.c.l.bf16 %v768
    %v1281 = vunpack.c.l.bf16 %v769
    %v1282 = vunpack.c.l.bf16 %v770
    %v1283 = vunpack.c.l.bf16 %v771
    %v1284 = vunpack.c.l.bf16 %v772
    %v1285 = vunpack.c.l.bf16 %v773
    %v1286 = vunpack.c.l.bf16 %v774
    %v1287 = vunpack.c.l.bf16 %v775
    %v1288 = vunpack.c.l.bf16 %v776
    %v1289 = vunpack.c.l.bf16 %v777
    %v1290 = vunpack.c.l.bf16 %v778
    %v1291 = vunpack.c.l.bf16 %v779
    %v1292 = vunpack.c.l.bf16 %v780
    %v1293 = vunpack.c.l.bf16 %v781
    %v1294 = vunpack.c.l.bf16 %v782
    %v1295 = vunpack.c.l.bf16 %v783
    %v1296 = vunpack.c.l.bf16 %v784
    %v1297 = vunpack.c.l.bf16 %v785
    %v1298 = vunpack.c.l.bf16 %v786
    %v1299 = vunpack.c.l.bf16 %v787
    %v1300 = vunpack.c.l.bf16 %v788
    %v1301 = vunpack.c.l.bf16 %v789
    %v1302 = vunpack.c.l.bf16 %v790
    %v1303 = vunpack.c.l.bf16 %v791
    %v1304 = vunpack.c.l.bf16 %v792
    %v1305 = vunpack.c.l.bf16 %v793
    %v1306 = vunpack.c.l.bf16 %v794
    %v1307 = vunpack.c.l.bf16 %v795
    %v1308 = vunpack.c.l.bf16 %v796
    %v1309 = vunpack.c.l.bf16 %v797
    %v1310 = vunpack.c.l.bf16 %v798
    %v1311 = vunpack.c.l.bf16 %v799
    %v1312 = vunpack.c.l.bf16 %v800
    %v1313 = vunpack.c.l.bf16 %v801
    %v1314 = vunpack.c.l.bf16 %v802
    %v1315 = vunpack.c.l.bf16 %v803
    %v1316 = vunpack.c.l.bf16 %v804
    %v1317 = vunpack.c.l.bf16 %v805
    %v1318 = vunpack.c.l.bf16 %v806
    %v1319 = vunpack.c.l.bf16 %v807
    %v1320 = vunpack.c.l.bf16 %v808
    %v1321 = vunpack.c.l.bf16 %v809
    %v1322 = vunpack.c.l.bf16 %v810
    %v1323 = vunpack.c.l.bf16 %v811
    %v1324 = vunpack.c.l.bf16 %v812
    %v1325 = vunpack.c.l.bf16 %v813
    %v1326 = vunpack.c.l.bf16 %v814
    %v1327 = vunpack.c.l.bf16 %v815
    %v1328 = vunpack.c.l.bf16 %v816
    %v1329 = vunpack.c.l.bf16 %v817
    %v1330 = vunpack.c.l.bf16 %v818
    %v1331 = vunpack.c.l.bf16 %v819
    %v1332 = vunpack.c.l.bf16 %v820
    %v1333 = vunpack.c.l.bf16 %v821
    %v1334 = vunpack.c.l.bf16 %v822
    %v1335 = vunpack.c.l.bf16 %v823
    %v1336 = vunpack.c.l.bf16 %v824
    %v1337 = vunpack.c.l.bf16 %v825
    %v1338 = vunpack.c.l.bf16 %v826
    %v1339 = vunpack.c.l.bf16 %v827
    %v1340 = vunpack.c.l.bf16 %v828
    %v1341 = vunpack.c.l.bf16 %v829
    %v1342 = vunpack.c.l.bf16 %v830
    %v1343 = vunpack.c.l.bf16 %v831
    %v1344 = vunpack.c.l.bf16 %v832
    %v1345 = vunpack.c.l.bf16 %v833
    %v1346 = vunpack.c.l.bf16 %v834
    %v1347 = vunpack.c.l.bf16 %v835
    %v1348 = vunpack.c.l.bf16 %v836
    %v1349 = vunpack.c.l.bf16 %v837
    %v1350 = vunpack.c.l.bf16 %v838
    %v1351 = vunpack.c.l.bf16 %v839
    %v1352 = vunpack.c.l.bf16 %v840
    %v1353 = vunpack.c.l.bf16 %v841
    %v1354 = vunpack.c.l.bf16 %v842
    %v1355 = vunpack.c.l.bf16 %v843
    %v1356 = vunpack.c.l.bf16 %v844
    %v1357 = vunpack.c.l.bf16 %v845
    %v1358 = vunpack.c.l.bf16 %v846
    %v1359 = vunpack.c.l.bf16 %v847
    %v1360 = vunpack.c.l.bf16 %v848
    %v1361 = vunpack.c.l.bf16 %v849
    %v1362 = vunpack.c.l.bf16 %v850
    %v1363 = vunpack.c.l.bf16 %v851
    %v1364 = vunpack.c.l.bf16 %v852
    %v1365 = vunpack.c.l.bf16 %v853
    %v1366 = vunpack.c.l.bf16 %v854
    %v1367 = vunpack.c.l.bf16 %v855
    %v1368 = vunpack.c.l.bf16 %v856
    %v1369 = vunpack.c.l.bf16 %v857
    %v1370 = vunpack.c.l.bf16 %v858
    %v1371 = vunpack.c.l.bf16 %v859
    %v1372 = vunpack.c.l.bf16 %v860
    %v1373 = vunpack.c.l.bf16 %v861
    %v1374 = vunpack.c.l.bf16 %v862
    %v1375 = vunpack.c.l.bf16 %v863
    %v1376 = vunpack.c.l.bf16 %v864
    %v1377 = vunpack.c.l.bf16 %v865
    %v1378 = vunpack.c.l.bf16 %v866
    %v1379 = vunpack.c.l.bf16 %v867
    %v1380 = vunpack.c.l.bf16 %v868
    %v1381 = vunpack.c.l.bf16 %v869
    %v1382 = vunpack.c.l.bf16 %v870
    %v1383 = vunpack.c.l.bf16 %v871
    %v1384 = vunpack.c.l.bf16 %v872
    %v1385 = vunpack.c.l.bf16 %v873
    %v1386 = vunpack.c.l.bf16 %v874
    %v1387 = vunpack.c.l.bf16 %v875
    %v1388 = vunpack.c.l.bf16 %v876
    %v1389 = vunpack.c.l.bf16 %v877
    %v1390 = vunpack.c.l.bf16 %v878
    %v1391 = vunpack.c.l.bf16 %v879
    %v1392 = vunpack.c.l.bf16 %v880
    %v1393 = vunpack.c.l.bf16 %v881
    %v1394 = vunpack.c.l.bf16 %v882
    %v1395 = vunpack.c.l.bf16 %v883
    %v1396 = vunpack.c.l.bf16 %v884
    %v1397 = vunpack.c.l.bf16 %v885
    %v1398 = vunpack.c.l.bf16 %v886
    %v1399 = vunpack.c.l.bf16 %v887
    %v1400 = vunpack.c.l.bf16 %v888
    %v1401 = vunpack.c.l.bf16 %v889
    %v1402 = vunpack.c.l.bf16 %v890
    %v1403 = vunpack.c.l.bf16 %v891
    %v1404 = vunpack.c.l.bf16 %v892
    %v1405 = vunpack.c.l.bf16 %v893
    %v1406 = vunpack.c.l.bf16 %v894
    %v1407 = vunpack.c.l.bf16 %v895
    %v1408 = vunpack.c.l.bf16 %v896
    %v1409 = vunpack.c.l.bf16 %v897
    %v1410 = vunpack.c.l.bf16 %v898
    %v1411 = vunpack.c.l.bf16 %v899
    %v1412 = vunpack.c.l.bf16 %v900
    %v1413 = vunpack.c.l.bf16 %v901
    %v1414 = vunpack.c.l.bf16 %v902
    %v1415 = vunpack.c.l.bf16 %v903
    %v1416 = vunpack.c.l.bf16 %v904
    %v1417 = vunpack.c.l.bf16 %v905
    %v1418 = vunpack.c.l.bf16 %v906
    %v1419 = vunpack.c.l.bf16 %v907
    %v1420 = vunpack.c.l.bf16 %v908
    %v1421 = vunpack.c.l.bf16 %v909
    %v1422 = vunpack.c.l.bf16 %v910
    %v1423 = vunpack.c.l.bf16 %v911
    %v1424 = vunpack.c.l.bf16 %v912
    %v1425 = vunpack.c.l.bf16 %v913
    %v1426 = vunpack.c.l.bf16 %v914
    %v1427 = vunpack.c.l.bf16 %v915
    %v1428 = vunpack.c.l.bf16 %v916
    %v1429 = vunpack.c.l.bf16 %v917
    %v1430 = vunpack.c.l.bf16 %v918
    %v1431 = vunpack.c.l.bf16 %v919
    %v1432 = vunpack.c.l.bf16 %v920
    %v1433 = vunpack.c.l.bf16 %v921
    %v1434 = vunpack.c.l.bf16 %v922
    %v1435 = vunpack.c.l.bf16 %v923
    %v1436 = vunpack.c.l.bf16 %v924
    %v1437 = vunpack.c.l.bf16 %v925
    %v1438 = vunpack.c.l.bf16 %v926
    %v1439 = vunpack.c.l.bf16 %v927
    %v1440 = vunpack.c.l.bf16 %v928
    %v1441 = vunpack.c.l.bf16 %v929
    %v1442 = vunpack.c.l.bf16 %v930
    %v1443 = vunpack.c.l.bf16 %v931
    %v1444 = vunpack.c.l.bf16 %v932
    %v1445 = vunpack.c.l.bf16 %v933
    %v1446 = vunpack.c.l.bf16 %v934
    %v1447 = vunpack.c.l.bf16 %v935
    %v1448 = vunpack.c.l.bf16 %v936
    %v1449 = vunpack.c.l.bf16 %v937
    %v1450 = vunpack.c.l.bf16 %v938
    %v1451 = vunpack.c.l.bf16 %v939
    %v1452 = vunpack.c.l.bf16 %v940
    %v1453 = vunpack.c.l.bf16 %v941
    %v1454 = vunpack.c.l.bf16 %v942
    %v1455 = vunpack.c.l.bf16 %v943
    %v1456 = vunpack.c.l.bf16 %v944
    %v1457 = vunpack.c.l.bf16 %v945
    %v1458 = vunpack.c.l.bf16 %v946
    %v1459 = vunpack.c.l.bf16 %v947
    %v1460 = vunpack.c.l.bf16 %v948
    %v1461 = vunpack.c.l.bf16 %v949
    %v1462 = vunpack.c.l.bf16 %v950
    %v1463 = vunpack.c.l.bf16 %v951
    %v1464 = vunpack.c.l.bf16 %v952
    %v1465 = vunpack.c.l.bf16 %v953
    %v1466 = vunpack.c.l.bf16 %v954
    %v1467 = vunpack.c.l.bf16 %v955
    %v1468 = vunpack.c.l.bf16 %v956
    %v1469 = vunpack.c.l.bf16 %v957
    %v1470 = vunpack.c.l.bf16 %v958
    %v1471 = vunpack.c.l.bf16 %v959
    %v1472 = vunpack.c.l.bf16 %v960
    %v1473 = vunpack.c.l.bf16 %v961
    %v1474 = vunpack.c.l.bf16 %v962
    %v1475 = vunpack.c.l.bf16 %v963
    %v1476 = vunpack.c.l.bf16 %v964
    %v1477 = vunpack.c.l.bf16 %v965
    %v1478 = vunpack.c.l.bf16 %v966
    %v1479 = vunpack.c.l.bf16 %v967
    %v1480 = vunpack.c.l.bf16 %v968
    %v1481 = vunpack.c.l.bf16 %v969
    %v1482 = vunpack.c.l.bf16 %v970
    %v1483 = vunpack.c.l.bf16 %v971
    %v1484 = vunpack.c.l.bf16 %v972
    %v1485 = vunpack.c.l.bf16 %v973
    %v1486 = vunpack.c.l.bf16 %v974
    %v1487 = vunpack.c.l.bf16 %v975
    %v1488 = vunpack.c.l.bf16 %v976
    %v1489 = vunpack.c.l.bf16 %v977
    %v1490 = vunpack.c.l.bf16 %v978
    %v1491 = vunpack.c.l.bf16 %v979
    %v1492 = vunpack.c.l.bf16 %v980
    %v1493 = vunpack.c.l.bf16 %v981
    %v1494 = vunpack.c.l.bf16 %v982
    %v1495 = vunpack.c.l.bf16 %v983
    %v1496 = vunpack.c.l.bf16 %v984
    %v1497 = vunpack.c.l.bf16 %v985
    %v1498 = vunpack.c.l.bf16 %v986
    %v1499 = vunpack.c.l.bf16 %v987
    %v1500 = vunpack.c.l.bf16 %v988
    %v1501 = vunpack.c.l.bf16 %v989
    %v1502 = vunpack.c.l.bf16 %v990
    %v1503 = vunpack.c.l.bf16 %v991
    %v1504 = vunpack.c.l.bf16 %v992
    %v1505 = vunpack.c.l.bf16 %v993
    %v1506 = vunpack.c.l.bf16 %v994
    %v1507 = vunpack.c.l.bf16 %v995
    %v1508 = vunpack.c.l.bf16 %v996
    %v1509 = vunpack.c.l.bf16 %v997
    %v1510 = vunpack.c.l.bf16 %v998
    %v1511 = vunpack.c.l.bf16 %v999
    %v1512 = vunpack.c.l.bf16 %v1000
    %v1513 = vunpack.c.l.bf16 %v1001
    %v1514 = vunpack.c.l.bf16 %v1002
    %v1515 = vunpack.c.l.bf16 %v1003
    %v1516 = vunpack.c.l.bf16 %v1004
    %v1517 = vunpack.c.l.bf16 %v1005
    %v1518 = vperm.slane %v19, 0
    %1519 = vmatpush.msra.mxu0 %v1021
    %1520 = vmatpush.msra.mxu0 %v1020
    %1521 = vmatpush.msra.mxu0 %v1019
    %1522 = vmatpush.msra.mxu0 %v1018
    %1523 = vmatpush.msra.mxu0 %v1017
    %1524 = vmatpush.msra.mxu0 %v1016
    %1525 = vmatpush.msra.mxu0 %v1015
    %1526 = vmatpush.msra.mxu0 %v1014
    %1527 = vmatpush.msra.mxu0 %v1013
    %1528 = vmatpush.msra.mxu0 %v1012
    %1529 = vmatpush.msra.mxu0 %v1011
    %1530 = vmatpush.msra.mxu0 %v1010
    %1531 = vmatpush.msra.mxu0 %v1009
    %1532 = vmatpush.msra.mxu0 %v1008
    %1533 = vmatpush.msra.mxu0 %v1007
    %1534 = vmatpush.msra.mxu0 %v1006
    %1535 = vmatmul.f32.gmra.mxu0 %v430
    %v1536 = vpop.f32.mrf.mxu0
    %v1537 = vadd.f32 %v1518, %v1536
    %1538 = vdwg.mxu0
    %1539 = vmatpush.msra.mxu0 %v1037
    %1540 = vmatpush.msra.mxu0 %v1036
    %1541 = vmatpush.msra.mxu0 %v1035
    %1542 = vmatpush.msra.mxu0 %v1034
    %1543 = vmatpush.msra.mxu0 %v1033
    %1544 = vmatpush.msra.mxu0 %v1032
    %1545 = vmatpush.msra.mxu0 %v1031
    %1546 = vmatpush.msra.mxu0 %v1030
    %1547 = vmatpush.msra.mxu0 %v1029
    %1548 = vmatpush.msra.mxu0 %v1028
    %1549 = vmatpush.msra.mxu0 %v1027
    %1550 = vmatpush.msra.mxu0 %v1026
    %1551 = vmatpush.msra.mxu0 %v1025
    %1552 = vmatpush.msra.mxu0 %v1024
    %1553 = vmatpush.msra.mxu0 %v1023
    %1554 = vmatpush.msra.mxu0 %v1022
    %1555 = vmatmul.f32.gmra.mxu0 %v434
    %v1556 = vpop.f32.mrf.mxu0
    %v1557 = vadd.f32 %v1537, %v1556
    %1558 = vdwg.mxu0
    %1559 = vmatpush.msra.mxu0 %v1053
    %1560 = vmatpush.msra.mxu0 %v1052
    %1561 = vmatpush.msra.mxu0 %v1051
    %1562 = vmatpush.msra.mxu0 %v1050
    %1563 = vmatpush.msra.mxu0 %v1049
    %1564 = vmatpush.msra.mxu0 %v1048
    %1565 = vmatpush.msra.mxu0 %v1047
    %1566 = vmatpush.msra.mxu0 %v1046
    %1567 = vmatpush.msra.mxu0 %v1045
    %1568 = vmatpush.msra.mxu0 %v1044
    %1569 = vmatpush.msra.mxu0 %v1043
    %1570 = vmatpush.msra.mxu0 %v1042
    %1571 = vmatpush.msra.mxu0 %v1041
    %1572 = vmatpush.msra.mxu0 %v1040
    %1573 = vmatpush.msra.mxu0 %v1039
    %1574 = vmatpush.msra.mxu0 %v1038
    %1575 = vmatmul.f32.gmra.mxu0 %v432
    %v1576 = vpop.f32.mrf.mxu0
    %v1577 = vadd.f32 %v1557, %v1576
    %1578 = vdwg.mxu0
    %1579 = vmatpush.msra.mxu0 %v1069
    %1580 = vmatpush.msra.mxu0 %v1068
    %1581 = vmatpush.msra.mxu0 %v1067
    %1582 = vmatpush.msra.mxu0 %v1066
    %1583 = vmatpush.msra.mxu0 %v1065
    %1584 = vmatpush.msra.mxu0 %v1064
    %1585 = vmatpush.msra.mxu0 %v1063
    %1586 = vmatpush.msra.mxu0 %v1062
    %1587 = vmatpush.msra.mxu0 %v1061
    %1588 = vmatpush.msra.mxu0 %v1060
    %1589 = vmatpush.msra.mxu0 %v1059
    %1590 = vmatpush.msra.mxu0 %v1058
    %1591 = vmatpush.msra.mxu0 %v1057
    %1592 = vmatpush.msra.mxu0 %v1056
    %1593 = vmatpush.msra.mxu0 %v1055
    %1594 = vmatpush.msra.mxu0 %v1054
    %1595 = vmatmul.f32.gmra.mxu0 %v436
    %v1596 = vpop.f32.mrf.mxu0
    %v1597 = vadd.f32 %v1577, %v1596
    %1598 = vdwg.mxu0
    %1599 = vmatpush.msra.mxu0 %v1085
    %1600 = vmatpush.msra.mxu0 %v1084
    %1601 = vmatpush.msra.mxu0 %v1083
    %1602 = vmatpush.msra.mxu0 %v1082
    %1603 = vmatpush.msra.mxu0 %v1081
    %1604 = vmatpush.msra.mxu0 %v1080
    %1605 = vmatpush.msra.mxu0 %v1079
    %1606 = vmatpush.msra.mxu0 %v1078
    %1607 = vmatpush.msra.mxu0 %v1077
    %1608 = vmatpush.msra.mxu0 %v1076
    %1609 = vmatpush.msra.mxu0 %v1075
    %1610 = vmatpush.msra.mxu0 %v1074
    %1611 = vmatpush.msra.mxu0 %v1073
    %1612 = vmatpush.msra.mxu0 %v1072
    %1613 = vmatpush.msra.mxu0 %v1071
    %1614 = vmatpush.msra.mxu0 %v1070
    %1615 = vmatmul.f32.gmra.mxu0 %v431
    %v1616 = vpop.f32.mrf.mxu0
    %v1617 = vadd.f32 %v1597, %v1616
    %1618 = vdwg.mxu0
    %1619 = vmatpush.msra.mxu0 %v1101
    %1620 = vmatpush.msra.mxu0 %v1100
    %1621 = vmatpush.msra.mxu0 %v1099
    %1622 = vmatpush.msra.mxu0 %v1098
    %1623 = vmatpush.msra.mxu0 %v1097
    %1624 = vmatpush.msra.mxu0 %v1096
    %1625 = vmatpush.msra.mxu0 %v1095
    %1626 = vmatpush.msra.mxu0 %v1094
    %1627 = vmatpush.msra.mxu0 %v1093
    %1628 = vmatpush.msra.mxu0 %v1092
    %1629 = vmatpush.msra.mxu0 %v1091
    %1630 = vmatpush.msra.mxu0 %v1090
    %1631 = vmatpush.msra.mxu0 %v1089
    %1632 = vmatpush.msra.mxu0 %v1088
    %1633 = vmatpush.msra.mxu0 %v1087
    %1634 = vmatpush.msra.mxu0 %v1086
    %1635 = vmatmul.f32.gmra.mxu0 %v435
    %v1636 = vpop.f32.mrf.mxu0
    %v1637 = vadd.f32 %v1617, %v1636
    %1638 = vdwg.mxu0
    %1639 = vmatpush.msra.mxu0 %v1117
    %1640 = vmatpush.msra.mxu0 %v1116
    %1641 = vmatpush.msra.mxu0 %v1115
    %1642 = vmatpush.msra.mxu0 %v1114
    %1643 = vmatpush.msra.mxu0 %v1113
    %1644 = vmatpush.msra.mxu0 %v1112
    %1645 = vmatpush.msra.mxu0 %v1111
    %1646 = vmatpush.msra.mxu0 %v1110
    %1647 = vmatpush.msra.mxu0 %v1109
    %1648 = vmatpush.msra.mxu0 %v1108
    %1649 = vmatpush.msra.mxu0 %v1107
    %1650 = vmatpush.msra.mxu0 %v1106
    %1651 = vmatpush.msra.mxu0 %v1105
    %1652 = vmatpush.msra.mxu0 %v1104
    %1653 = vmatpush.msra.mxu0 %v1103
    %1654 = vmatpush.msra.mxu0 %v1102
    %1655 = vmatmul.f32.gmra.mxu0 %v433
    %v1656 = vpop.f32.mrf.mxu0
    %v1657 = vadd.f32 %v1637, %v1656
    %1658 = vdwg.mxu0
    %1659 = vmatpush.msra.mxu0 %v1133
    %1660 = vmatpush.msra.mxu0 %v1132
    %1661 = vmatpush.msra.mxu0 %v1131
    %1662 = vmatpush.msra.mxu0 %v1130
    %1663 = vmatpush.msra.mxu0 %v1129
    %1664 = vmatpush.msra.mxu0 %v1128
    %1665 = vmatpush.msra.mxu0 %v1127
    %1666 = vmatpush.msra.mxu0 %v1126
    %1667 = vmatpush.msra.mxu0 %v1125
    %1668 = vmatpush.msra.mxu0 %v1124
    %1669 = vmatpush.msra.mxu0 %v1123
    %1670 = vmatpush.msra.mxu0 %v1122
    %1671 = vmatpush.msra.mxu0 %v1121
    %1672 = vmatpush.msra.mxu0 %v1120
    %1673 = vmatpush.msra.mxu0 %v1119
    %1674 = vmatpush.msra.mxu0 %v1118
    %1675 = vmatmul.f32.gmra.mxu0 %v437
    %v1676 = vpop.f32.mrf.mxu0
    %v1677 = vadd.f32 %v1657, %v1676
    %1678 = vdwg.mxu0
    %1679 = vmatpush.msra.mxu0 %v1149
    %1680 = vmatpush.msra.mxu0 %v1148
    %1681 = vmatpush.msra.mxu0 %v1147
    %1682 = vmatpush.msra.mxu0 %v1146
    %1683 = vmatpush.msra.mxu0 %v1145
    %1684 = vmatpush.msra.mxu0 %v1144
    %1685 = vmatpush.msra.mxu0 %v1143
    %1686 = vmatpush.msra.mxu0 %v1142
    %1687 = vmatpush.msra.mxu0 %v1141
    %1688 = vmatpush.msra.mxu0 %v1140
    %1689 = vmatpush.msra.mxu0 %v1139
    %1690 = vmatpush.msra.mxu0 %v1138
    %1691 = vmatpush.msra.mxu0 %v1137
    %1692 = vmatpush.msra.mxu0 %v1136
    %1693 = vmatpush.msra.mxu0 %v1135
    %1694 = vmatpush.msra.mxu0 %v1134
    %1695 = vmatmul.f32.gmra.mxu0 %v446
    %v1696 = vpop.f32.mrf.mxu0
    %v1697 = vadd.f32 %v1677, %v1696
    %1698 = vdwg.mxu0
    %1699 = vmatpush.msra.mxu0 %v1165
    %1700 = vmatpush.msra.mxu0 %v1164
    %1701 = vmatpush.msra.mxu0 %v1163
    %1702 = vmatpush.msra.mxu0 %v1162
    %1703 = vmatpush.msra.mxu0 %v1161
    %1704 = vmatpush.msra.mxu0 %v1160
    %1705 = vmatpush.msra.mxu0 %v1159
    %1706 = vmatpush.msra.mxu0 %v1158
    %1707 = vmatpush.msra.mxu0 %v1157
    %1708 = vmatpush.msra.mxu0 %v1156
    %1709 = vmatpush.msra.mxu0 %v1155
    %1710 = vmatpush.msra.mxu0 %v1154
    %1711 = vmatpush.msra.mxu0 %v1153
    %1712 = vmatpush.msra.mxu0 %v1152
    %1713 = vmatpush.msra.mxu0 %v1151
    %1714 = vmatpush.msra.mxu0 %v1150
    %1715 = vmatmul.f32.gmra.mxu0 %v447
    %v1716 = vpop.f32.mrf.mxu0
    %v1717 = vadd.f32 %v1697, %v1716
    %1718 = vdwg.mxu0
    %1719 = vmatpush.msra.mxu0 %v1181
    %1720 = vmatpush.msra.mxu0 %v1180
    %1721 = vmatpush.msra.mxu0 %v1179
    %1722 = vmatpush.msra.mxu0 %v1178
    %1723 = vmatpush.msra.mxu0 %v1177
    %1724 = vmatpush.msra.mxu0 %v1176
    %1725 = vmatpush.msra.mxu0 %v1175
    %1726 = vmatpush.msra.mxu0 %v1174
    %1727 = vmatpush.msra.mxu0 %v1173
    %1728 = vmatpush.msra.mxu0 %v1172
    %1729 = vmatpush.msra.mxu0 %v1171
    %1730 = vmatpush.msra.mxu0 %v1170
    %1731 = vmatpush.msra.mxu0 %v1169
    %1732 = vmatpush.msra.mxu0 %v1168
    %1733 = vmatpush.msra.mxu0 %v1167
    %1734 = vmatpush.msra.mxu0 %v1166
    %1735 = vmatmul.f32.gmra.mxu0 %v448
    %v1736 = vpop.f32.mrf.mxu0
    %v1737 = vadd.f32 %v1717, %v1736
    %1738 = vdwg.mxu0
    %1739 = vmatpush.msra.mxu0 %v1197
    %1740 = vmatpush.msra.mxu0 %v1196
    %1741 = vmatpush.msra.mxu0 %v1195
    %1742 = vmatpush.msra.mxu0 %v1194
    %1743 = vmatpush.msra.mxu0 %v1193
    %1744 = vmatpush.msra.mxu0 %v1192
    %1745 = vmatpush.msra.mxu0 %v1191
    %1746 = vmatpush.msra.mxu0 %v1190
    %1747 = vmatpush.msra.mxu0 %v1189
    %1748 = vmatpush.msra.mxu0 %v1188
    %1749 = vmatpush.msra.mxu0 %v1187
    %1750 = vmatpush.msra.mxu0 %v1186
    %1751 = vmatpush.msra.mxu0 %v1185
    %1752 = vmatpush.msra.mxu0 %v1184
    %1753 = vmatpush.msra.mxu0 %v1183
    %1754 = vmatpush.msra.mxu0 %v1182
    %1755 = vmatmul.f32.gmra.mxu0 %v449
    %v1756 = vpop.f32.mrf.mxu0
    %v1757 = vadd.f32 %v1737, %v1756
    %1758 = vdwg.mxu0
    %1759 = vmatpush.msra.mxu0 %v1213
    %1760 = vmatpush.msra.mxu0 %v1212
    %1761 = vmatpush.msra.mxu0 %v1211
    %1762 = vmatpush.msra.mxu0 %v1210
    %1763 = vmatpush.msra.mxu0 %v1209
    %1764 = vmatpush.msra.mxu0 %v1208
    %1765 = vmatpush.msra.mxu0 %v1207
    %1766 = vmatpush.msra.mxu0 %v1206
    %1767 = vmatpush.msra.mxu0 %v1205
    %1768 = vmatpush.msra.mxu0 %v1204
    %1769 = vmatpush.msra.mxu0 %v1203
    %1770 = vmatpush.msra.mxu0 %v1202
    %1771 = vmatpush.msra.mxu0 %v1201
    %1772 = vmatpush.msra.mxu0 %v1200
    %1773 = vmatpush.msra.mxu0 %v1199
    %1774 = vmatpush.msra.mxu0 %v1198
    %1775 = vmatmul.f32.gmra.mxu0 %v450
    %v1776 = vpop.f32.mrf.mxu0
    %v1777 = vadd.f32 %v1757, %v1776
    %1778 = vdwg.mxu0
    %1779 = vmatpush.msra.mxu0 %v1229
    %1780 = vmatpush.msra.mxu0 %v1228
    %1781 = vmatpush.msra.mxu0 %v1227
    %1782 = vmatpush.msra.mxu0 %v1226
    %1783 = vmatpush.msra.mxu0 %v1225
    %1784 = vmatpush.msra.mxu0 %v1224
    %1785 = vmatpush.msra.mxu0 %v1223
    %1786 = vmatpush.msra.mxu0 %v1222
    %1787 = vmatpush.msra.mxu0 %v1221
    %1788 = vmatpush.msra.mxu0 %v1220
    %1789 = vmatpush.msra.mxu0 %v1219
    %1790 = vmatpush.msra.mxu0 %v1218
    %1791 = vmatpush.msra.mxu0 %v1217
    %1792 = vmatpush.msra.mxu0 %v1216
    %1793 = vmatpush.msra.mxu0 %v1215
    %1794 = vmatpush.msra.mxu0 %v1214
    %1795 = vmatmul.f32.gmra.mxu0 %v451
    %v1796 = vpop.f32.mrf.mxu0
    %v1797 = vadd.f32 %v1777, %v1796
    %1798 = vdwg.mxu0
    %1799 = vmatpush.msra.mxu0 %v1245
    %1800 = vmatpush.msra.mxu0 %v1244
    %1801 = vmatpush.msra.mxu0 %v1243
    %1802 = vmatpush.msra.mxu0 %v1242
    %1803 = vmatpush.msra.mxu0 %v1241
    %1804 = vmatpush.msra.mxu0 %v1240
    %1805 = vmatpush.msra.mxu0 %v1239
    %1806 = vmatpush.msra.mxu0 %v1238
    %1807 = vmatpush.msra.mxu0 %v1237
    %1808 = vmatpush.msra.mxu0 %v1236
    %1809 = vmatpush.msra.mxu0 %v1235
    %1810 = vmatpush.msra.mxu0 %v1234
    %1811 = vmatpush.msra.mxu0 %v1233
    %1812 = vmatpush.msra.mxu0 %v1232
    %1813 = vmatpush.msra.mxu0 %v1231
    %1814 = vmatpush.msra.mxu0 %v1230
    %1815 = vmatmul.f32.gmra.mxu0 %v452
    %v1816 = vpop.f32.mrf.mxu0
    %v1817 = vadd.f32 %v1797, %v1816
    %1818 = vdwg.mxu0
    %1819 = vmatpush.msra.mxu0 %v1261
    %1820 = vmatpush.msra.mxu0 %v1260
    %1821 = vmatpush.msra.mxu0 %v1259
    %1822 = vmatpush.msra.mxu0 %v1258
    %1823 = vmatpush.msra.mxu0 %v1257
    %1824 = vmatpush.msra.mxu0 %v1256
    %1825 = vmatpush.msra.mxu0 %v1255
    %1826 = vmatpush.msra.mxu0 %v1254
    %1827 = vmatpush.msra.mxu0 %v1253
    %1828 = vmatpush.msra.mxu0 %v1252
    %1829 = vmatpush.msra.mxu0 %v1251
    %1830 = vmatpush.msra.mxu0 %v1250
    %1831 = vmatpush.msra.mxu0 %v1249
    %1832 = vmatpush.msra.mxu0 %v1248
    %1833 = vmatpush.msra.mxu0 %v1247
    %1834 = vmatpush.msra.mxu0 %v1246
    %1835 = vmatmul.f32.gmra.mxu0 %v453
    %v1836 = vpop.f32.mrf.mxu0
    %v1837 = vadd.f32 %v1817, %v1836
    %1838 = vdwg.mxu0
    %1839 = vmatpush.msra.mxu0 %v1277
    %1840 = vmatpush.msra.mxu0 %v1276
    %1841 = vmatpush.msra.mxu0 %v1275
    %1842 = vmatpush.msra.mxu0 %v1274
    %1843 = vmatpush.msra.mxu0 %v1273
    %1844 = vmatpush.msra.mxu0 %v1272
    %1845 = vmatpush.msra.mxu0 %v1271
    %1846 = vmatpush.msra.mxu0 %v1270
    %1847 = vmatpush.msra.mxu0 %v1269
    %1848 = vmatpush.msra.mxu0 %v1268
    %1849 = vmatpush.msra.mxu0 %v1267
    %1850 = vmatpush.msra.mxu0 %v1266
    %1851 = vmatpush.msra.mxu0 %v1265
    %1852 = vmatpush.msra.mxu0 %v1264
    %1853 = vmatpush.msra.mxu0 %v1263
    %1854 = vmatpush.msra.mxu0 %v1262
    %1855 = vmatmul.f32.gmra.mxu0 %v462
    %v1856 = vpop.f32.mrf.mxu0
    %v1857 = vadd.f32 %v1837, %v1856
    %1858 = vdwg.mxu0
    %1859 = vmatpush.msra.mxu0 %v1293
    %1860 = vmatpush.msra.mxu0 %v1292
    %1861 = vmatpush.msra.mxu0 %v1291
    %1862 = vmatpush.msra.mxu0 %v1290
    %1863 = vmatpush.msra.mxu0 %v1289
    %1864 = vmatpush.msra.mxu0 %v1288
    %1865 = vmatpush.msra.mxu0 %v1287
    %1866 = vmatpush.msra.mxu0 %v1286
    %1867 = vmatpush.msra.mxu0 %v1285
    %1868 = vmatpush.msra.mxu0 %v1284
    %1869 = vmatpush.msra.mxu0 %v1283
    %1870 = vmatpush.msra.mxu0 %v1282
    %1871 = vmatpush.msra.mxu0 %v1281
    %1872 = vmatpush.msra.mxu0 %v1280
    %1873 = vmatpush.msra.mxu0 %v1279
    %1874 = vmatpush.msra.mxu0 %v1278
    %1875 = vmatmul.f32.gmra.mxu0 %v463
    %v1876 = vpop.f32.mrf.mxu0
    %v1877 = vadd.f32 %v1857, %v1876
    %1878 = vdwg.mxu0
    %1879 = vmatpush.msra.mxu0 %v1309
    %1880 = vmatpush.msra.mxu0 %v1308
    %1881 = vmatpush.msra.mxu0 %v1307
    %1882 = vmatpush.msra.mxu0 %v1306
    %1883 = vmatpush.msra.mxu0 %v1305
    %1884 = vmatpush.msra.mxu0 %v1304
    %1885 = vmatpush.msra.mxu0 %v1303
    %1886 = vmatpush.msra.mxu0 %v1302
    %1887 = vmatpush.msra.mxu0 %v1301
    %1888 = vmatpush.msra.mxu0 %v1300
    %1889 = vmatpush.msra.mxu0 %v1299
    %1890 = vmatpush.msra.mxu0 %v1298
    %1891 = vmatpush.msra.mxu0 %v1297
    %1892 = vmatpush.msra.mxu0 %v1296
    %1893 = vmatpush.msra.mxu0 %v1295
    %1894 = vmatpush.msra.mxu0 %v1294
    %1895 = vmatmul.f32.gmra.mxu0 %v464
    %v1896 = vpop.f32.mrf.mxu0
    %v1897 = vadd.f32 %v1877, %v1896
    %1898 = vdwg.mxu0
    %1899 = vmatpush.msra.mxu0 %v1325
    %1900 = vmatpush.msra.mxu0 %v1324
    %1901 = vmatpush.msra.mxu0 %v1323
    %1902 = vmatpush.msra.mxu0 %v1322
    %1903 = vmatpush.msra.mxu0 %v1321
    %1904 = vmatpush.msra.mxu0 %v1320
    %1905 = vmatpush.msra.mxu0 %v1319
    %1906 = vmatpush.msra.mxu0 %v1318
    %1907 = vmatpush.msra.mxu0 %v1317
    %1908 = vmatpush.msra.mxu0 %v1316
    %1909 = vmatpush.msra.mxu0 %v1315
    %1910 = vmatpush.msra.mxu0 %v1314
    %1911 = vmatpush.msra.mxu0 %v1313
    %1912 = vmatpush.msra.mxu0 %v1312
    %1913 = vmatpush.msra.mxu0 %v1311
    %1914 = vmatpush.msra.mxu0 %v1310
    %1915 = vmatmul.f32.gmra.mxu0 %v465
    %v1916 = vpop.f32.mrf.mxu0
    %v1917 = vadd.f32 %v1897, %v1916
    %1918 = vdwg.mxu0
    %1919 = vmatpush.msra.mxu0 %v1341
    %1920 = vmatpush.msra.mxu0 %v1340
    %1921 = vmatpush.msra.mxu0 %v1339
    %1922 = vmatpush.msra.mxu0 %v1338
    %1923 = vmatpush.msra.mxu0 %v1337
    %1924 = vmatpush.msra.mxu0 %v1336
    %1925 = vmatpush.msra.mxu0 %v1335
    %1926 = vmatpush.msra.mxu0 %v1334
    %1927 = vmatpush.msra.mxu0 %v1333
    %1928 = vmatpush.msra.mxu0 %v1332
    %1929 = vmatpush.msra.mxu0 %v1331
    %1930 = vmatpush.msra.mxu0 %v1330
    %1931 = vmatpush.msra.mxu0 %v1329
    %1932 = vmatpush.msra.mxu0 %v1328
    %1933 = vmatpush.msra.mxu0 %v1327
    %1934 = vmatpush.msra.mxu0 %v1326
    %1935 = vmatmul.f32.gmra.mxu0 %v466
    %v1936 = vpop.f32.mrf.mxu0
    %v1937 = vadd.f32 %v1917, %v1936
    %1938 = vdwg.mxu0
    %1939 = vmatpush.msra.mxu0 %v1357
    %1940 = vmatpush.msra.mxu0 %v1356
    %1941 = vmatpush.msra.mxu0 %v1355
    %1942 = vmatpush.msra.mxu0 %v1354
    %1943 = vmatpush.msra.mxu0 %v1353
    %1944 = vmatpush.msra.mxu0 %v1352
    %1945 = vmatpush.msra.mxu0 %v1351
    %1946 = vmatpush.msra.mxu0 %v1350
    %1947 = vmatpush.msra.mxu0 %v1349
    %1948 = vmatpush.msra.mxu0 %v1348
    %1949 = vmatpush.msra.mxu0 %v1347
    %1950 = vmatpush.msra.mxu0 %v1346
    %1951 = vmatpush.msra.mxu0 %v1345
    %1952 = vmatpush.msra.mxu0 %v1344
    %1953 = vmatpush.msra.mxu0 %v1343
    %1954 = vmatpush.msra.mxu0 %v1342
    %1955 = vmatmul.f32.gmra.mxu0 %v467
    %v1956 = vpop.f32.mrf.mxu0
    %v1957 = vadd.f32 %v1937, %v1956
    %1958 = vdwg.mxu0
    %1959 = vmatpush.msra.mxu0 %v1373
    %1960 = vmatpush.msra.mxu0 %v1372
    %1961 = vmatpush.msra.mxu0 %v1371
    %1962 = vmatpush.msra.mxu0 %v1370
    %1963 = vmatpush.msra.mxu0 %v1369
    %1964 = vmatpush.msra.mxu0 %v1368
    %1965 = vmatpush.msra.mxu0 %v1367
    %1966 = vmatpush.msra.mxu0 %v1366
    %1967 = vmatpush.msra.mxu0 %v1365
    %1968 = vmatpush.msra.mxu0 %v1364
    %1969 = vmatpush.msra.mxu0 %v1363
    %1970 = vmatpush.msra.mxu0 %v1362
    %1971 = vmatpush.msra.mxu0 %v1361
    %1972 = vmatpush.msra.mxu0 %v1360
    %1973 = vmatpush.msra.mxu0 %v1359
    %1974 = vmatpush.msra.mxu0 %v1358
    %1975 = vmatmul.f32.gmra.mxu0 %v468
    %v1976 = vpop.f32.mrf.mxu0
    %v1977 = vadd.f32 %v1957, %v1976
    %1978 = vdwg.mxu0
    %1979 = vmatpush.msra.mxu0 %v1389
    %1980 = vmatpush.msra.mxu0 %v1388
    %1981 = vmatpush.msra.mxu0 %v1387
    %1982 = vmatpush.msra.mxu0 %v1386
    %1983 = vmatpush.msra.mxu0 %v1385
    %1984 = vmatpush.msra.mxu0 %v1384
    %1985 = vmatpush.msra.mxu0 %v1383
    %1986 = vmatpush.msra.mxu0 %v1382
    %1987 = vmatpush.msra.mxu0 %v1381
    %1988 = vmatpush.msra.mxu0 %v1380
    %1989 = vmatpush.msra.mxu0 %v1379
    %1990 = vmatpush.msra.mxu0 %v1378
    %1991 = vmatpush.msra.mxu0 %v1377
    %1992 = vmatpush.msra.mxu0 %v1376
    %1993 = vmatpush.msra.mxu0 %v1375
    %1994 = vmatpush.msra.mxu0 %v1374
    %1995 = vmatmul.f32.gmra.mxu0 %v469
    %v1996 = vpop.f32.mrf.mxu0
    %v1997 = vadd.f32 %v1977, %v1996
    %1998 = vdwg.mxu0
    %1999 = vmatpush.msra.mxu0 %v1405
    %2000 = vmatpush.msra.mxu0 %v1404
    %2001 = vmatpush.msra.mxu0 %v1403
    %2002 = vmatpush.msra.mxu0 %v1402
    %2003 = vmatpush.msra.mxu0 %v1401
    %2004 = vmatpush.msra.mxu0 %v1400
    %2005 = vmatpush.msra.mxu0 %v1399
    %2006 = vmatpush.msra.mxu0 %v1398
    %2007 = vmatpush.msra.mxu0 %v1397
    %2008 = vmatpush.msra.mxu0 %v1396
    %2009 = vmatpush.msra.mxu0 %v1395
    %2010 = vmatpush.msra.mxu0 %v1394
    %2011 = vmatpush.msra.mxu0 %v1393
    %2012 = vmatpush.msra.mxu0 %v1392
    %2013 = vmatpush.msra.mxu0 %v1391
    %2014 = vmatpush.msra.mxu0 %v1390
    %2015 = vmatmul.f32.gmra.mxu0 %v470
    %v2016 = vpop.f32.mrf.mxu0
    %v2017 = vadd.f32 %v1997, %v2016
    %2018 = vdwg.mxu0
    %2019 = vmatpush.msra.mxu0 %v1421
    %2020 = vmatpush.msra.mxu0 %v1420
    %2021 = vmatpush.msra.mxu0 %v1419
    %2022 = vmatpush.msra.mxu0 %v1418
    %2023 = vmatpush.msra.mxu0 %v1417
    %2024 = vmatpush.msra.mxu0 %v1416
    %2025 = vmatpush.msra.mxu0 %v1415
    %2026 = vmatpush.msra.mxu0 %v1414
    %2027 = vmatpush.msra.mxu0 %v1413
    %2028 = vmatpush.msra.mxu0 %v1412
    %2029 = vmatpush.msra.mxu0 %v1411
    %2030 = vmatpush.msra.mxu0 %v1410
    %2031 = vmatpush.msra.mxu0 %v1409
    %2032 = vmatpush.msra.mxu0 %v1408
    %2033 = vmatpush.msra.mxu0 %v1407
    %2034 = vmatpush.msra.mxu0 %v1406
    %2035 = vmatmul.f32.gmra.mxu0 %v471
    %v2036 = vpop.f32.mrf.mxu0
    %v2037 = vadd.f32 %v2017, %v2036
    %2038 = vdwg.mxu0
    %2039 = vmatpush.msra.mxu0 %v1437
    %2040 = vmatpush.msra.mxu0 %v1436
    %2041 = vmatpush.msra.mxu0 %v1435
    %2042 = vmatpush.msra.mxu0 %v1434
    %2043 = vmatpush.msra.mxu0 %v1433
    %2044 = vmatpush.msra.mxu0 %v1432
    %2045 = vmatpush.msra.mxu0 %v1431
    %2046 = vmatpush.msra.mxu0 %v1430
    %2047 = vmatpush.msra.mxu0 %v1429
    %2048 = vmatpush.msra.mxu0 %v1428
    %2049 = vmatpush.msra.mxu0 %v1427
    %2050 = vmatpush.msra.mxu0 %v1426
    %2051 = vmatpush.msra.mxu0 %v1425
    %2052 = vmatpush.msra.mxu0 %v1424
    %2053 = vmatpush.msra.mxu0 %v1423
    %2054 = vmatpush.msra.mxu0 %v1422
    %2055 = vmatmul.f32.gmra.mxu0 %v472
    %v2056 = vpop.f32.mrf.mxu0
    %v2057 = vadd.f32 %v2037, %v2056
    %2058 = vdwg.mxu0
    %2059 = vmatpush.msra.mxu0 %v1453
    %2060 = vmatpush.msra.mxu0 %v1452
    %2061 = vmatpush.msra.mxu0 %v1451
    %2062 = vmatpush.msra.mxu0 %v1450
    %2063 = vmatpush.msra.mxu0 %v1449
    %2064 = vmatpush.msra.mxu0 %v1448
    %2065 = vmatpush.msra.mxu0 %v1447
    %2066 = vmatpush.msra.mxu0 %v1446
    %2067 = vmatpush.msra.mxu0 %v1445
    %2068 = vmatpush.msra.mxu0 %v1444
    %2069 = vmatpush.msra.mxu0 %v1443
    %2070 = vmatpush.msra.mxu0 %v1442
    %2071 = vmatpush.msra.mxu0 %v1441
    %2072 = vmatpush.msra.mxu0 %v1440
    %2073 = vmatpush.msra.mxu0 %v1439
    %2074 = vmatpush.msra.mxu0 %v1438
    %2075 = vmatmul.f32.gmra.mxu0 %v473
    %v2076 = vpop.f32.mrf.mxu0
    %v2077 = vadd.f32 %v2057, %v2076
    %2078 = vdwg.mxu0
    %2079 = vmatpush.msra.mxu0 %v1469
    %2080 = vmatpush.msra.mxu0 %v1468
    %2081 = vmatpush.msra.mxu0 %v1467
    %2082 = vmatpush.msra.mxu0 %v1466
    %2083 = vmatpush.msra.mxu0 %v1465
    %2084 = vmatpush.msra.mxu0 %v1464
    %2085 = vmatpush.msra.mxu0 %v1463
    %2086 = vmatpush.msra.mxu0 %v1462
    %2087 = vmatpush.msra.mxu0 %v1461
    %2088 = vmatpush.msra.mxu0 %v1460
    %2089 = vmatpush.msra.mxu0 %v1459
    %2090 = vmatpush.msra.mxu0 %v1458
    %2091 = vmatpush.msra.mxu0 %v1457
    %2092 = vmatpush.msra.mxu0 %v1456
    %2093 = vmatpush.msra.mxu0 %v1455
    %2094 = vmatpush.msra.mxu0 %v1454
    %2095 = vmatmul.f32.gmra.mxu0 %v474
    %v2096 = vpop.f32.mrf.mxu0
    %v2097 = vadd.f32 %v2077, %v2096
    %2098 = vdwg.mxu0
    %2099 = vmatpush.msra.mxu0 %v1485
    %2100 = vmatpush.msra.mxu0 %v1484
    %2101 = vmatpush.msra.mxu0 %v1483
    %2102 = vmatpush.msra.mxu0 %v1482
    %2103 = vmatpush.msra.mxu0 %v1481
    %2104 = vmatpush.msra.mxu0 %v1480
    %2105 = vmatpush.msra.mxu0 %v1479
    %2106 = vmatpush.msra.mxu0 %v1478
    %2107 = vmatpush.msra.mxu0 %v1477
    %2108 = vmatpush.msra.mxu0 %v1476
    %2109 = vmatpush.msra.mxu0 %v1475
    %2110 = vmatpush.msra.mxu0 %v1474
    %2111 = vmatpush.msra.mxu0 %v1473
    %2112 = vmatpush.msra.mxu0 %v1472
    %2113 = vmatpush.msra.mxu0 %v1471
    %2114 = vmatpush.msra.mxu0 %v1470
    %2115 = vmatmul.f32.gmra.mxu0 %v475
    %v2116 = vpop.f32.mrf.mxu0
    %v2117 = vadd.f32 %v2097, %v2116
    %2118 = vdwg.mxu0
    %2119 = vmatpush.msra.mxu0 %v1501
    %2120 = vmatpush.msra.mxu0 %v1500
    %2121 = vmatpush.msra.mxu0 %v1499
    %2122 = vmatpush.msra.mxu0 %v1498
    %2123 = vmatpush.msra.mxu0 %v1497
    %2124 = vmatpush.msra.mxu0 %v1496
    %2125 = vmatpush.msra.mxu0 %v1495
    %2126 = vmatpush.msra.mxu0 %v1494
    %2127 = vmatpush.msra.mxu0 %v1493
    %2128 = vmatpush.msra.mxu0 %v1492
    %2129 = vmatpush.msra.mxu0 %v1491
    %2130 = vmatpush.msra.mxu0 %v1490
    %2131 = vmatpush.msra.mxu0 %v1489
    %2132 = vmatpush.msra.mxu0 %v1488
    %2133 = vmatpush.msra.mxu0 %v1487
    %2134 = vmatpush.msra.mxu0 %v1486
    %2135 = vmatmul.f32.gmra.mxu0 %v476
    %v2136 = vpop.f32.mrf.mxu0
    %v2137 = vadd.f32 %v2117, %v2136
    %2138 = vdwg.mxu0
    %2139 = vmatpush.msra.mxu0 %v1517
    %2140 = vmatpush.msra.mxu0 %v1516
    %2141 = vmatpush.msra.mxu0 %v1515
    %2142 = vmatpush.msra.mxu0 %v1514
    %2143 = vmatpush.msra.mxu0 %v1513
    %2144 = vmatpush.msra.mxu0 %v1512
    %2145 = vmatpush.msra.mxu0 %v1511
    %2146 = vmatpush.msra.mxu0 %v1510
    %2147 = vmatpush.msra.mxu0 %v1509
    %2148 = vmatpush.msra.mxu0 %v1508
    %2149 = vmatpush.msra.mxu0 %v1507
    %2150 = vmatpush.msra.mxu0 %v1506
    %2151 = vmatpush.msra.mxu0 %v1505
    %2152 = vmatpush.msra.mxu0 %v1504
    %2153 = vmatpush.msra.mxu0 %v1503
    %2154 = vmatpush.msra.mxu0 %v1502
    %2155 = vmatmul.f32.gmra.mxu0 %v477
    %v2156 = vpop.f32.mrf.mxu0
    %v2157 = vadd.f32 %v2137, %v2156
    %2158 = vdwg.mxu0
    %v2159 = vmax.f32 %v2157, 0.0
    %v2160 = vperm.slane %v20, 0
    %vm2161 = vcmask 261120
    %v2163 = vsel %vm2161, %v2159, 0
    %2165 = vmatpush.msra.mxu0 0.0
    %2166 = vmatpush.msra.mxu0 0.0
    %2167 = vmatpush.msra.mxu0 0.0
    %2168 = vmatpush.msra.mxu0 0.0
    %2169 = vmatpush.msra.mxu0 0.0
    %2170 = vmatpush.msra.mxu0 0.0
    %2171 = vmatpush.msra.mxu0 0.0
    %2172 = vmatpush.msra.mxu0 0.0
    %2173 = vmatpush.msra.mxu0 0.0
    %2174 = vmatpush.msra.mxu0 0.0
    %2175 = vmatpush.msra.mxu0 0.0
    %2176 = vmatpush.msra.mxu0 0.0
    %2177 = vmatpush.msra.mxu0 %v24
    %2178 = vmatpush.msra.mxu0 %v23
    %2179 = vmatpush.msra.mxu0 %v22
    %2180 = vmatpush.msra.mxu0 %v21
    %2181 = vmatmul.f32.gmra.mxu0 %v2163
    %v2182 = vpop.f32.mrf.mxu0
    %v2183 = vadd.f32 %v2160, %v2182
    %2184 = vdwg.mxu0
    %vm2185 = vcmask 41984
    %v2186 = vsel %vm2185, %v2183, -inf
    %2187 = vmax.xlane.f32.xlu0 %v2186
    %v2188 = vpop.xlane.xlu0 %2187
    %v2189 = vsub.f32 %v2183, %v2188
    %v2190 = vmul.f32 %v2189, 1.442695
    %v2191 = vpow.pop %v2190
    %v2192 = vsel %vm2185, %v2191, 0.0
    %2193 = vadd.xlane.f32.xlu0 %v2192
    %v2194 = vpop.xlane.xlu0 %2193
    %v2195 = vrcp.pop %v2194
    %v2196 = vmul.f32 %v2194, %v2195
    %v2197 = vsub.f32 1.0, %v2196
    %v2198 = vmul.f32 %v2195, %v2197
    %v2199 = vadd.f32 %v2195, %v2198
    %vm2200 = vweird.f32 %v2194
    %vm2201 = vweird.f32 %v2195
    %vm2202 = vmor %vm2200, %vm2201
    %v2203 = vsel %vm2202, %v2195, %v2199
    %v2204 = vand.u32 2147483647, %v2194
    %vm2205 = vcmp.eq.f32.partialorder %v2204, 8.507059e+37
    %v2206 = vand.u32 %v2194, 2147483648
    %v2207 = vor.u32 1.1754944e-38, %v2206
    %v2208 = vsel %vm2205, %v2207, %v2203
    %v2209 = vmul.f32 %v2191, %v2208
    %2210 = vst.msk [vmem:[#allocation2] sm:$0x3] %vm2185, %v2209
    // Predicated region
    $region14: #{cnn_actor_pallas.1} parent=1 // pred_check
      _
    $region15: #{cnn_actor_pallas.1} parent=1 // pred_check_branch
      %2212 = sbr.rel (0) target = $region17
    $region16: #{cnn_actor_pallas.1} parent=1 // pred_region
      %2214 = vsyncadd [#allocation3], 0
      %s2216 = sshll.u32 [#allocation2], 4
      %s2217 = int_to_ptr.vmem [resolvable:$true] %s2216
      %s2218 = sshll.u32 %s3, 4
      %s2219 = int_to_ptr.hbm [resolvable:$true] %s2218
      %2221 = dma.vmem_to_hbm [thread:$0]  %s2217, 32, %s2219, [#allocation3]
    $region17: #{cnn_actor_pallas.1} parent=1 // pred_fallthru
      _
    // Predicated region
    $region18: #{cnn_actor_pallas.1} parent=1 // pred_check
      _
    $region19: #{cnn_actor_pallas.1} parent=1 // pred_check_branch
      %2223 = sbr.rel (0) target = $region21
    $region20: #{cnn_actor_pallas.1} parent=1 // pred_region
      %2225 = dma.done [#allocation3], 32
    $region21: #{cnn_actor_pallas.1} parent=1 // pred_fallthru
      _
    %2226 = vsyncpa [#allocation3], 1

</llo_original>
